<compile_context>
chip_gen: v7x
topology: tpu7x:2x2x1
jax: 0.10.0
libtpu: 0.0.40
codegen_flags: <defaults>
</compile_context>

<pallas_src>
import functools
import math

import jax
import jax.numpy as jnp
from jax.experimental import pallas as pl
from jax.experimental.pallas import tpu as pltpu

NUM_HEADS = 4
LN_EPS = 1e-5
NEG_INF = -1e9


def _encoder_stack_kernel(
    q_ref,       # (B_blk, T, D)  f32   layer-0 input activations
    bias_ref,    # (N, N)         f32   additive causal + same-batch mask
    wq_ref,      # (1, D, U)      bf16
    wk_ref,      # (1, D, U)      bf16
    wv_ref,      # (1, D, U)      bf16
    g1_ref,      # (1, 1, U)      f32   LayerNorm-1 gamma
    b1_ref,      # (1, 1, U)      f32   LayerNorm-1 beta
    w1_ref,      # (1, U, F)      bf16  FFN first linear (Conv1d k=1)
    fb1_ref,     # (1, 1, F)      f32
    w2_ref,      # (1, F, U)      bf16  FFN second linear (Conv1d k=1)
    fb2_ref,     # (1, 1, U)      f32
    g2_ref,      # (1, 1, U)      f32   LayerNorm-2 gamma
    b2_ref,      # (1, 1, U)      f32   LayerNorm-2 beta
    out_ref,     # (B_blk, T, U)  f32
    act_ref,     # (N, U)         f32   VMEM scratch: activation resident across layers
    *, num_heads,
):
    layer = pl.program_id(1)
    num_layers = pl.num_programs(1)
    b_blk, t, d = q_ref.shape
    n = b_blk * t
    u = wq_ref.shape[2]
    dh = u // num_heads
    scale = 1.0 / math.sqrt(dh)

    # Load the layer-0 input once per batch tile; later layers read the
    # activation straight from VMEM (no HBM round-trip between layers).
    @pl.when(layer == 0)
    def _():
        act_ref[...] = q_ref[...].reshape(n, d)

    x = act_ref[...]                           # (N, U) f32
    xb = x.astype(jnp.bfloat16)

    # --- Q / K / V projections: all B_blk*T rows batched on the MXU ---
    # Attention scale is folded into Q once (cheaper than scaling each
    # (N, N) score tile per head).
    q = jnp.dot(xb, wq_ref[0], preferred_element_type=jnp.float32) * scale
    k = jnp.dot(xb, wk_ref[0], preferred_element_type=jnp.float32)
    v = jnp.dot(xb, wv_ref[0], preferred_element_type=jnp.float32)
    qb = q.astype(jnp.bfloat16)
    kb = k.astype(jnp.bfloat16)
    vb = v.astype(jnp.bfloat16)

    bias = bias_ref[...]                       # (N, N) f32: 0 or NEG_INF

    # --- multi-head causal attention (no lane slices, no concatenate) ---
    # Head h is selected by zeroing the other heads' lanes of K and V: the
    # masked-out lanes contribute exactly 0 to the contraction, so
    # Q . (K*mask_h)^T == Q_h K_h^T and P_h . (V*mask_h) writes head h's
    # output directly into its own lanes of the (N, U) accumulator.
    lane = jax.lax.broadcasted_iota(jnp.int32, (n, u), 1)
    zero_b = jnp.zeros((n, u), jnp.bfloat16)
    attn = jnp.zeros((n, u), jnp.float32)
    for h in range(num_heads):
        hmask = jnp.logical_and(lane >= h * dh, lane < (h + 1) * dh)
        kh = jnp.where(hmask, kb, zero_b)
        vh = jnp.where(hmask, vb, zero_b)
        s = jax.lax.dot_general(qb, kh, (((1,), (1,)), ((), ())),
                                preferred_element_type=jnp.float32)   # (N, N)
        s = s + bias                           # mask applied in f32
        s = s - jnp.max(s, axis=-1, keepdims=True)
        p = jnp.exp(s)
        # Normalize the (N, U) PV output rather than the (N, N) prob tile
        # (cheaper for realistic N >> U); reciprocal runs on the EUP slot.
        inv_l = pl.reciprocal(jnp.sum(p, axis=-1, keepdims=True), approx=True)
        pv = jnp.dot(p.astype(jnp.bfloat16), vh,
                     preferred_element_type=jnp.float32)              # (N, U)
        attn = attn + pv * inv_l

    # --- residual + LayerNorm 1 (f32) ---
    res1 = attn + x
    mu1 = jnp.mean(res1, axis=-1, keepdims=True)
    var1 = jnp.mean(jnp.square(res1 - mu1), axis=-1, keepdims=True)
    y1 = (res1 - mu1) * jax.lax.rsqrt(var1 + LN_EPS) * g1_ref[0] + b1_ref[0]

    # --- PositionWiseFFN: linear -> ReLU -> linear ---
    h1 = jnp.dot(y1.astype(jnp.bfloat16), w1_ref[0],
                 preferred_element_type=jnp.float32) + fb1_ref[0]
    h1 = jnp.maximum(h1, 0.0)
    h2 = jnp.dot(h1.astype(jnp.bfloat16), w2_ref[0],
                 preferred_element_type=jnp.float32) + fb2_ref[0]

    # --- residual + LayerNorm 2 (f32) ---
    res2 = h2 + y1
    mu2 = jnp.mean(res2, axis=-1, keepdims=True)
    var2 = jnp.mean(jnp.square(res2 - mu2), axis=-1, keepdims=True)
    y2 = (res2 - mu2) * jax.lax.rsqrt(var2 + LN_EPS) * g2_ref[0] + b2_ref[0]

    # Keep the activation resident in VMEM for the next layer.
    act_ref[...] = y2

    # HBM output is written only after the last layer; the out block is
    # resident across the layer grid axis and flushed once per batch tile.
    @pl.when(layer == num_layers - 1)
    def _():
        out_ref[...] = y2.reshape(b_blk, t, u).astype(out_ref.dtype)


def transformer_encoder_forward(query, layer_params, *, batch_block=None,
                                num_heads=NUM_HEADS):
    """Mirrors TransformerEncoder.forward: returns (out, curr_past=[])."""
    B, T, D = query.shape
    L = len(layer_params)
    U = layer_params[0]["wq"].shape[1]
    F = layer_params[0]["w1"].shape[1]
    assert U == D, "residual connections require unit == query_dim"

    b_blk = B if batch_block is None else batch_block
    assert B % b_blk == 0
    n = b_blk * T

    # Stack per-layer params along a leading layer axis.  Matmul operands are
    # bf16 (MXU-native); LayerNorm / bias params stay f32.
    stack = lambda name: jnp.stack([p[name] for p in layer_params], axis=0)
    wq = stack("wq").astype(jnp.bfloat16)      # (L, D, U)
    wk = stack("wk").astype(jnp.bfloat16)
    wv = stack("wv").astype(jnp.bfloat16)
    w1 = stack("w1").astype(jnp.bfloat16)      # (L, U, F)
    w2 = stack("w2").astype(jnp.bfloat16)      # (L, F, U)
    g1 = stack("ln1_g")                        # (L, 1, U)
    b1 = stack("ln1_b")
    fb1 = stack("b1")                          # (L, 1, F)
    fb2 = stack("b2")                          # (L, 1, U)
    g2 = stack("ln2_g")
    b2 = stack("ln2_b")

    # Additive attention bias over flattened (batch_in_block * T) rows/cols:
    # 0 where (same batch element AND causal), NEG_INF elsewhere.  Built once
    # in plain JAX; the block index is constant so it is DMA'd once and stays
    # resident in VMEM for every layer / batch tile.
    r = jnp.arange(n)[:, None]
    c = jnp.arange(n)[None, :]
    bias = jnp.where((r // T == c // T) & (r >= c), 0.0, NEG_INF)
    bias = bias.astype(jnp.float32)

    layer_spec = lambda d0, d1: pl.BlockSpec((1, d0, d1), lambda b, l: (l, 0, 0))

    out = pl.pallas_call(
        functools.partial(_encoder_stack_kernel, num_heads=num_heads),
        out_shape=jax.ShapeDtypeStruct((B, T, U), jnp.float32),
        grid_spec=pltpu.PrefetchScalarGridSpec(
            num_scalar_prefetch=0,
            grid=(B // b_blk, L),              # layer axis last (sequential)
            in_specs=[
                pl.BlockSpec((b_blk, T, D), lambda b, l: (b, 0, 0)),  # query
                pl.BlockSpec((n, n), lambda b, l: (0, 0)),            # attn bias
                layer_spec(D, U),              # wq
                layer_spec(D, U),              # wk
                layer_spec(D, U),              # wv
                layer_spec(1, U),              # ln1 gamma
                layer_spec(1, U),              # ln1 beta
                layer_spec(U, F),              # ffn w1
                layer_spec(1, F),              # ffn b1
                layer_spec(F, U),              # ffn w2
                layer_spec(1, U),              # ffn b2
                layer_spec(1, U),              # ln2 gamma
                layer_spec(1, U),              # ln2 beta
            ],
            out_specs=pl.BlockSpec((b_blk, T, U), lambda b, l: (b, 0, 0)),
            scratch_shapes=[pltpu.VMEM((n, U), jnp.float32)],
        ),
        compiler_params=pltpu.CompilerParams(
            dimension_semantics=("parallel", "arbitrary"),
            # Explicit scoped-VMEM budget (raise further for realistic D/U/F;
            # on v7x's 64 MiB VMEM keep bf16 weights / tile the FFN instead).
            vmem_limit_bytes=32 * 1024 * 1024,
        ),
    )(query, bias, wq, wk, wv, g1, b1, w1, fb1, w2, fb2, g2, b2)

    curr_past = []  # reference forward never populates curr_past
    return out, curr_past


def init_params(key, query_dim, att_num_units, ffn_num_unit):
    layers = []
    for i, unit in enumerate(att_num_units):
        assert unit == query_dim, "residual connections require unit == query_dim"
        k = jax.random.fold_in(key, i)
        ks = jax.random.split(k, 4)
        layers.append({
            "wq": 0.02 * jax.random.normal(ks[0], (query_dim, unit), jnp.float32),
            "wk": 0.02 * jax.random.normal(ks[1], (query_dim, unit), jnp.float32),
            "wv": 0.02 * jax.random.normal(ks[2], (query_dim, unit), jnp.float32),
            "ln1_g": jnp.ones((1, unit), jnp.float32),
            "ln1_b": jnp.zeros((1, unit), jnp.float32),
            "w1": 0.02 * jax.random.normal(ks[3], (unit, ffn_num_unit), jnp.float32),
            "b1": jnp.zeros((1, ffn_num_unit), jnp.float32),
            "w2": 0.02 * jax.random.normal(
                jax.random.fold_in(k, 99), (ffn_num_unit, unit), jnp.float32),
            "b2": jnp.zeros((1, unit), jnp.float32),
            "ln2_g": jnp.ones((1, unit), jnp.float32),
            "ln2_b": jnp.zeros((1, unit), jnp.float32),
        })
    return layers


if __name__ == "__main__":
    # Small, module-consistent shapes.
    B, T = 2, 8
    query_dim = 32
    att_num_units = [32, 32]   # two encoder layers
    ffn_num_unit = 64
    max_ext = 64.0             # unused by forward()

    key = jax.random.PRNGKey(0)
    k_in, k_p = jax.random.split(key)
    query = jax.random.normal(k_in, (B, T, query_dim), jnp.float32)

    layer_params = init_params(k_p, query_dim, att_num_units, ffn_num_unit)

    out, curr_past = transformer_encoder_forward(query, layer_params)
    out = jax.block_until_ready(out)
    assert out.shape == (B, T, att_num_units[-1])
    assert bool(jnp.all(jnp.isfinite(out)))
    assert curr_past == []
    print("KERNEL_OK")
</pallas_src>

<mosaic_0001>
module attributes {stable_mosaic.version = 11 : i64} {
  func.func @_encoder_stack_kernel(%arg0: i32, %arg1: i32, %arg2: memref<2x8x32xf32, #tpu.memory_space<vmem>>, %arg3: memref<16x16xf32, #tpu.memory_space<vmem>>, %arg4: memref<1x32x32xbf16, #tpu.memory_space<vmem>>, %arg5: memref<1x32x32xbf16, #tpu.memory_space<vmem>>, %arg6: memref<1x32x32xbf16, #tpu.memory_space<vmem>>, %arg7: memref<1x1x32xf32, #tpu.memory_space<vmem>>, %arg8: memref<1x1x32xf32, #tpu.memory_space<vmem>>, %arg9: memref<1x32x64xbf16, #tpu.memory_space<vmem>>, %arg10: memref<1x1x64xf32, #tpu.memory_space<vmem>>, %arg11: memref<1x64x32xbf16, #tpu.memory_space<vmem>>, %arg12: memref<1x1x32xf32, #tpu.memory_space<vmem>>, %arg13: memref<1x1x32xf32, #tpu.memory_space<vmem>>, %arg14: memref<1x1x32xf32, #tpu.memory_space<vmem>>, %arg15: memref<2x8x32xf32, #tpu.memory_space<vmem>>, %arg16: memref<16x32xf32, #tpu.memory_space<vmem>>) attributes {dimension_semantics = [#tpu.dimension_semantics<parallel>, #tpu.dimension_semantics<arbitrary>], iteration_bounds = array<i64: 1, 2>, scalar_prefetch = 0 : i64, scratch_operands = 1 : i64, tpu.core_type = #tpu.core_type<tc>, window_params = [{transform_indices = @transform_0, window_bounds = array<i64: 2, 8, 32>}, {pipeline_mode = #tpu.pipeline_mode<synchronous>, transform_indices = @transform_1, window_bounds = array<i64: 16, 16>}, {transform_indices = @transform_2, window_bounds = array<i64: 1, 32, 32>}, {transform_indices = @transform_3, window_bounds = array<i64: 1, 32, 32>}, {transform_indices = @transform_4, window_bounds = array<i64: 1, 32, 32>}, {transform_indices = @transform_5, window_bounds = array<i64: 1, 1, 32>}, {transform_indices = @transform_6, window_bounds = array<i64: 1, 1, 32>}, {transform_indices = @transform_7, window_bounds = array<i64: 1, 32, 64>}, {transform_indices = @transform_8, window_bounds = array<i64: 1, 1, 64>}, {transform_indices = @transform_9, window_bounds = array<i64: 1, 64, 32>}, {transform_indices = @transform_10, window_bounds = array<i64: 1, 1, 32>}, {transform_indices = @transform_11, window_bounds = array<i64: 1, 1, 32>}, {transform_indices = @transform_12, window_bounds = array<i64: 1, 1, 32>}, {transform_indices = @transform_13, window_bounds = array<i64: 2, 8, 32>}]} {
    %c0_i32 = arith.constant 0 : i32
    %0 = arith.cmpi eq, %arg1, %c0_i32 : i32
    %1 = arith.extui %0 : i1 to i32
    %c0_i32_0 = arith.constant 0 : i32
    %2 = arith.cmpi ne, %1, %c0_i32_0 : i32
    scf.if %2 {
      %c0_78 = arith.constant 0 : index
      %c0_79 = arith.constant 0 : index
      %c0_80 = arith.constant 0 : index
      %187 = vector.load %arg2[%c0_78, %c0_79, %c0_80] : memref<2x8x32xf32, #tpu.memory_space<vmem>>, vector<2x8x32xf32>
      %188 = vector.shape_cast %187 : vector<2x8x32xf32> to vector<16x32xf32>
      %c0_81 = arith.constant 0 : index
      %c0_82 = arith.constant 0 : index
      %189 = vector.load %arg16[%c0_81, %c0_82] : memref<16x32xf32, #tpu.memory_space<vmem>>, vector<16x32xf32>
      tpu.vector_store %arg16[%c0_81, %c0_82], %188 {strides = array<i32>} : memref<16x32xf32, #tpu.memory_space<vmem>>, vector<16x32xf32>,
    } else {
    }
    %c0 = arith.constant 0 : index
    %c0_1 = arith.constant 0 : index
    %3 = vector.load %arg16[%c0, %c0_1] : memref<16x32xf32, #tpu.memory_space<vmem>>, vector<16x32xf32>
    %4 = arith.truncf %3 : vector<16x32xf32> to vector<16x32xbf16>
    %c0_2 = arith.constant 0 : index
    %c0_3 = arith.constant 0 : index
    %c0_4 = arith.constant 0 : index
    %5 = vector.load %arg4[%c0_2, %c0_3, %c0_4] : memref<1x32x32xbf16, #tpu.memory_space<vmem>>, vector<1x32x32xbf16>
    %6 = vector.shape_cast %5 : vector<1x32x32xbf16> to vector<32x32xbf16>
    %cst = arith.constant dense<0.000000e+00> : vector<16x32xf32>
    %7 = tpu.matmul %4, %6, %cst {dimension_numbers = #tpu.dot_dimension_numbers<[1], [0], [0], [1], [0, 0, 1, 1], [], []>} : vector<16x32xbf16>, vector<32x32xbf16>, vector<16x32xf32> -> vector<16x32xf32>
    %cst_5 = arith.constant 0.353553385 : f32
    %8 = vector.broadcast %cst_5 : f32 to vector<16x32xf32>
    %9 = arith.mulf %7, %8 : vector<16x32xf32>
    %c0_6 = arith.constant 0 : index
    %c0_7 = arith.constant 0 : index
    %c0_8 = arith.constant 0 : index
    %10 = vector.load %arg5[%c0_6, %c0_7, %c0_8] : memref<1x32x32xbf16, #tpu.memory_space<vmem>>, vector<1x32x32xbf16>
    %11 = vector.shape_cast %10 : vector<1x32x32xbf16> to vector<32x32xbf16>
    %cst_9 = arith.constant dense<0.000000e+00> : vector<16x32xf32>
    %12 = tpu.matmul %4, %11, %cst_9 {dimension_numbers = #tpu.dot_dimension_numbers<[1], [0], [0], [1], [0, 0, 1, 1], [], []>} : vector<16x32xbf16>, vector<32x32xbf16>, vector<16x32xf32> -> vector<16x32xf32>
    %c0_10 = arith.constant 0 : index
    %c0_11 = arith.constant 0 : index
    %c0_12 = arith.constant 0 : index
    %13 = vector.load %arg6[%c0_10, %c0_11, %c0_12] : memref<1x32x32xbf16, #tpu.memory_space<vmem>>, vector<1x32x32xbf16>
    %14 = vector.shape_cast %13 : vector<1x32x32xbf16> to vector<32x32xbf16>
    %cst_13 = arith.constant dense<0.000000e+00> : vector<16x32xf32>
    %15 = tpu.matmul %4, %14, %cst_13 {dimension_numbers = #tpu.dot_dimension_numbers<[1], [0], [0], [1], [0, 0, 1, 1], [], []>} : vector<16x32xbf16>, vector<32x32xbf16>, vector<16x32xf32> -> vector<16x32xf32>
    %16 = arith.truncf %9 : vector<16x32xf32> to vector<16x32xbf16>
    %17 = arith.truncf %12 : vector<16x32xf32> to vector<16x32xbf16>
    %18 = arith.truncf %15 : vector<16x32xf32> to vector<16x32xbf16>
    %c0_14 = arith.constant 0 : index
    %c0_15 = arith.constant 0 : index
    %19 = vector.load %arg3[%c0_14, %c0_15] : memref<16x16xf32, #tpu.memory_space<vmem>>, vector<16x16xf32>
    %20 = tpu.iota {dimensions = array<i32: 1>} : vector<16x32xi32>
    %cst_16 = arith.constant 0.000000e+00 : bf16
    %21 = vector.broadcast %cst_16 : bf16 to vector<16x32xbf16>
    %cst_17 = arith.constant 0.000000e+00 : f32
    %22 = vector.broadcast %cst_17 : f32 to vector<16x32xf32>
    %c0_i32_18 = arith.constant 0 : i32
    %23 = vector.broadcast %c0_i32_18 : i32 to vector<16x32xi32>
    %24 = arith.cmpi sge, %20, %23 : vector<16x32xi32>
    %c8_i32 = arith.constant 8 : i32
    %25 = vector.broadcast %c8_i32 : i32 to vector<16x32xi32>
    %26 = arith.cmpi slt, %20, %25 : vector<16x32xi32>
    %27 = arith.andi %24, %26 : vector<16x32xi1>
    %28 = arith.select %27, %17, %21 : vector<16x32xi1>, vector<16x32xbf16>
    %29 = arith.select %27, %18, %21 : vector<16x32xi1>, vector<16x32xbf16>
    %cst_19 = arith.constant dense<0.000000e+00> : vector<16x16xf32>
    %30 = tpu.matmul %16, %28, %cst_19 {dimension_numbers = #tpu.dot_dimension_numbers<[1], [1], [0], [0], [0, 0, 1, 0], [], []>} : vector<16x32xbf16>, vector<16x32xbf16>, vector<16x16xf32> -> vector<16x16xf32>
    %31 = arith.addf %30, %19 : vector<16x16xf32>
    %cst_20 = arith.constant dense<0xFF800000> : vector<16xf32>
    %32 = vector.multi_reduction <maximumf>, %31, %cst_20 [1] : vector<16x16xf32> to vector<16xf32>
    %33 = vector.shape_cast %32 : vector<16xf32> to vector<16x1xf32>
    %34 = vector.broadcast %33 : vector<16x1xf32> to vector<16x16xf32>
    %35 = arith.subf %31, %34 : vector<16x16xf32>
    %36 = math.exp %35 : vector<16x16xf32>
    %cst_21 = arith.constant dense<0.000000e+00> : vector<16xf32>
    %37 = vector.multi_reduction <add>, %36, %cst_21 [1] : vector<16x16xf32> to vector<16xf32>
    %38 = vector.shape_cast %37 : vector<16xf32> to vector<16x1xf32>
    %39 = tpu.reciprocal %38 {approx = true} : vector<16x1xf32> -> vector<16x1xf32>
    %40 = arith.truncf %36 : vector<16x16xf32> to vector<16x16xbf16>
    %cst_22 = arith.constant dense<0.000000e+00> : vector<16x32xf32>
    %41 = tpu.matmul %40, %29, %cst_22 {dimension_numbers = #tpu.dot_dimension_numbers<[1], [0], [0], [1], [0, 0, 1, 1], [], []>} : vector<16x16xbf16>, vector<16x32xbf16>, vector<16x32xf32> -> vector<16x32xf32>
    %42 = vector.broadcast %39 : vector<16x1xf32> to vector<16x32xf32>
    %43 = arith.mulf %41, %42 : vector<16x32xf32>
    %44 = arith.addf %22, %43 : vector<16x32xf32>
    %c8_i32_23 = arith.constant 8 : i32
    %45 = vector.broadcast %c8_i32_23 : i32 to vector<16x32xi32>
    %46 = arith.cmpi sge, %20, %45 : vector<16x32xi32>
    %c16_i32 = arith.constant 16 : i32
    %47 = vector.broadcast %c16_i32 : i32 to vector<16x32xi32>
    %48 = arith.cmpi slt, %20, %47 : vector<16x32xi32>
    %49 = arith.andi %46, %48 : vector<16x32xi1>
    %50 = arith.select %49, %17, %21 : vector<16x32xi1>, vector<16x32xbf16>
    %51 = arith.select %49, %18, %21 : vector<16x32xi1>, vector<16x32xbf16>
    %cst_24 = arith.constant dense<0.000000e+00> : vector<16x16xf32>
    %52 = tpu.matmul %16, %50, %cst_24 {dimension_numbers = #tpu.dot_dimension_numbers<[1], [1], [0], [0], [0, 0, 1, 0], [], []>} : vector<16x32xbf16>, vector<16x32xbf16>, vector<16x16xf32> -> vector<16x16xf32>
    %53 = arith.addf %52, %19 : vector<16x16xf32>
    %cst_25 = arith.constant dense<0xFF800000> : vector<16xf32>
    %54 = vector.multi_reduction <maximumf>, %53, %cst_25 [1] : vector<16x16xf32> to vector<16xf32>
    %55 = vector.shape_cast %54 : vector<16xf32> to vector<16x1xf32>
    %56 = vector.broadcast %55 : vector<16x1xf32> to vector<16x16xf32>
    %57 = arith.subf %53, %56 : vector<16x16xf32>
    %58 = math.exp %57 : vector<16x16xf32>
    %cst_26 = arith.constant dense<0.000000e+00> : vector<16xf32>
    %59 = vector.multi_reduction <add>, %58, %cst_26 [1] : vector<16x16xf32> to vector<16xf32>
    %60 = vector.shape_cast %59 : vector<16xf32> to vector<16x1xf32>
    %61 = tpu.reciprocal %60 {approx = true} : vector<16x1xf32> -> vector<16x1xf32>
    %62 = arith.truncf %58 : vector<16x16xf32> to vector<16x16xbf16>
    %cst_27 = arith.constant dense<0.000000e+00> : vector<16x32xf32>
    %63 = tpu.matmul %62, %51, %cst_27 {dimension_numbers = #tpu.dot_dimension_numbers<[1], [0], [0], [1], [0, 0, 1, 1], [], []>} : vector<16x16xbf16>, vector<16x32xbf16>, vector<16x32xf32> -> vector<16x32xf32>
    %64 = vector.broadcast %61 : vector<16x1xf32> to vector<16x32xf32>
    %65 = arith.mulf %63, %64 : vector<16x32xf32>
    %66 = arith.addf %44, %65 : vector<16x32xf32>
    %c16_i32_28 = arith.constant 16 : i32
    %67 = vector.broadcast %c16_i32_28 : i32 to vector<16x32xi32>
    %68 = arith.cmpi sge, %20, %67 : vector<16x32xi32>
    %c24_i32 = arith.constant 24 : i32
    %69 = vector.broadcast %c24_i32 : i32 to vector<16x32xi32>
    %70 = arith.cmpi slt, %20, %69 : vector<16x32xi32>
    %71 = arith.andi %68, %70 : vector<16x32xi1>
    %72 = arith.select %71, %17, %21 : vector<16x32xi1>, vector<16x32xbf16>
    %73 = arith.select %71, %18, %21 : vector<16x32xi1>, vector<16x32xbf16>
    %cst_29 = arith.constant dense<0.000000e+00> : vector<16x16xf32>
    %74 = tpu.matmul %16, %72, %cst_29 {dimension_numbers = #tpu.dot_dimension_numbers<[1], [1], [0], [0], [0, 0, 1, 0], [], []>} : vector<16x32xbf16>, vector<16x32xbf16>, vector<16x16xf32> -> vector<16x16xf32>
    %75 = arith.addf %74, %19 : vector<16x16xf32>
    %cst_30 = arith.constant dense<0xFF800000> : vector<16xf32>
    %76 = vector.multi_reduction <maximumf>, %75, %cst_30 [1] : vector<16x16xf32> to vector<16xf32>
    %77 = vector.shape_cast %76 : vector<16xf32> to vector<16x1xf32>
    %78 = vector.broadcast %77 : vector<16x1xf32> to vector<16x16xf32>
    %79 = arith.subf %75, %78 : vector<16x16xf32>
    %80 = math.exp %79 : vector<16x16xf32>
    %cst_31 = arith.constant dense<0.000000e+00> : vector<16xf32>
    %81 = vector.multi_reduction <add>, %80, %cst_31 [1] : vector<16x16xf32> to vector<16xf32>
    %82 = vector.shape_cast %81 : vector<16xf32> to vector<16x1xf32>
    %83 = tpu.reciprocal %82 {approx = true} : vector<16x1xf32> -> vector<16x1xf32>
    %84 = arith.truncf %80 : vector<16x16xf32> to vector<16x16xbf16>
    %cst_32 = arith.constant dense<0.000000e+00> : vector<16x32xf32>
    %85 = tpu.matmul %84, %73, %cst_32 {dimension_numbers = #tpu.dot_dimension_numbers<[1], [0], [0], [1], [0, 0, 1, 1], [], []>} : vector<16x16xbf16>, vector<16x32xbf16>, vector<16x32xf32> -> vector<16x32xf32>
    %86 = vector.broadcast %83 : vector<16x1xf32> to vector<16x32xf32>
    %87 = arith.mulf %85, %86 : vector<16x32xf32>
    %88 = arith.addf %66, %87 : vector<16x32xf32>
    %c24_i32_33 = arith.constant 24 : i32
    %89 = vector.broadcast %c24_i32_33 : i32 to vector<16x32xi32>
    %90 = arith.cmpi sge, %20, %89 : vector<16x32xi32>
    %c32_i32 = arith.constant 32 : i32
    %91 = vector.broadcast %c32_i32 : i32 to vector<16x32xi32>
    %92 = arith.cmpi slt, %20, %91 : vector<16x32xi32>
    %93 = arith.andi %90, %92 : vector<16x32xi1>
    %94 = arith.select %93, %17, %21 : vector<16x32xi1>, vector<16x32xbf16>
    %95 = arith.select %93, %18, %21 : vector<16x32xi1>, vector<16x32xbf16>
    %cst_34 = arith.constant dense<0.000000e+00> : vector<16x16xf32>
    %96 = tpu.matmul %16, %94, %cst_34 {dimension_numbers = #tpu.dot_dimension_numbers<[1], [1], [0], [0], [0, 0, 1, 0], [], []>} : vector<16x32xbf16>, vector<16x32xbf16>, vector<16x16xf32> -> vector<16x16xf32>
    %97 = arith.addf %96, %19 : vector<16x16xf32>
    %cst_35 = arith.constant dense<0xFF800000> : vector<16xf32>
    %98 = vector.multi_reduction <maximumf>, %97, %cst_35 [1] : vector<16x16xf32> to vector<16xf32>
    %99 = vector.shape_cast %98 : vector<16xf32> to vector<16x1xf32>
    %100 = vector.broadcast %99 : vector<16x1xf32> to vector<16x16xf32>
    %101 = arith.subf %97, %100 : vector<16x16xf32>
    %102 = math.exp %101 : vector<16x16xf32>
    %cst_36 = arith.constant dense<0.000000e+00> : vector<16xf32>
    %103 = vector.multi_reduction <add>, %102, %cst_36 [1] : vector<16x16xf32> to vector<16xf32>
    %104 = vector.shape_cast %103 : vector<16xf32> to vector<16x1xf32>
    %105 = tpu.reciprocal %104 {approx = true} : vector<16x1xf32> -> vector<16x1xf32>
    %106 = arith.truncf %102 : vector<16x16xf32> to vector<16x16xbf16>
    %cst_37 = arith.constant dense<0.000000e+00> : vector<16x32xf32>
    %107 = tpu.matmul %106, %95, %cst_37 {dimension_numbers = #tpu.dot_dimension_numbers<[1], [0], [0], [1], [0, 0, 1, 1], [], []>} : vector<16x16xbf16>, vector<16x32xbf16>, vector<16x32xf32> -> vector<16x32xf32>
    %108 = vector.broadcast %105 : vector<16x1xf32> to vector<16x32xf32>
    %109 = arith.mulf %107, %108 : vector<16x32xf32>
    %110 = arith.addf %88, %109 : vector<16x32xf32>
    %111 = arith.addf %110, %3 : vector<16x32xf32>
    %cst_38 = arith.constant dense<0.000000e+00> : vector<16xf32>
    %112 = vector.multi_reduction <add>, %111, %cst_38 [1] : vector<16x32xf32> to vector<16xf32>
    %113 = vector.shape_cast %112 : vector<16xf32> to vector<16x1xf32>
    %cst_39 = arith.constant 3.200000e+01 : f32
    %114 = vector.broadcast %cst_39 : f32 to vector<16x1xf32>
    %115 = arith.divf %113, %114 : vector<16x1xf32>
    %116 = vector.broadcast %115 : vector<16x1xf32> to vector<16x32xf32>
    %117 = arith.subf %111, %116 : vector<16x32xf32>
    %118 = arith.mulf %117, %117 : vector<16x32xf32>
    %cst_40 = arith.constant dense<0.000000e+00> : vector<16xf32>
    %119 = vector.multi_reduction <add>, %118, %cst_40 [1] : vector<16x32xf32> to vector<16xf32>
    %120 = vector.shape_cast %119 : vector<16xf32> to vector<16x1xf32>
    %cst_41 = arith.constant 3.200000e+01 : f32
    %121 = vector.broadcast %cst_41 : f32 to vector<16x1xf32>
    %122 = arith.divf %120, %121 : vector<16x1xf32>
    %123 = vector.broadcast %115 : vector<16x1xf32> to vector<16x32xf32>
    %124 = arith.subf %111, %123 : vector<16x32xf32>
    %cst_42 = arith.constant 9.99999974E-6 : f32
    %125 = vector.broadcast %cst_42 : f32 to vector<16x1xf32>
    %126 = arith.addf %122, %125 : vector<16x1xf32>
    %127 = math.rsqrt %126 : vector<16x1xf32>
    %128 = vector.broadcast %127 : vector<16x1xf32> to vector<16x32xf32>
    %129 = arith.mulf %124, %128 : vector<16x32xf32>
    %c0_43 = arith.constant 0 : index
    %c0_44 = arith.constant 0 : index
    %c0_45 = arith.constant 0 : index
    %130 = vector.load %arg7[%c0_43, %c0_44, %c0_45] : memref<1x1x32xf32, #tpu.memory_space<vmem>>, vector<1x1x32xf32>
    %131 = vector.shape_cast %130 : vector<1x1x32xf32> to vector<1x32xf32>
    %132 = vector.broadcast %131 : vector<1x32xf32> to vector<16x32xf32>
    %133 = arith.mulf %129, %132 : vector<16x32xf32>
    %c0_46 = arith.constant 0 : index
    %c0_47 = arith.constant 0 : index
    %c0_48 = arith.constant 0 : index
    %134 = vector.load %arg8[%c0_46, %c0_47, %c0_48] : memref<1x1x32xf32, #tpu.memory_space<vmem>>, vector<1x1x32xf32>
    %135 = vector.shape_cast %134 : vector<1x1x32xf32> to vector<1x32xf32>
    %136 = vector.broadcast %135 : vector<1x32xf32> to vector<16x32xf32>
    %137 = arith.addf %133, %136 : vector<16x32xf32>
    %138 = arith.truncf %137 : vector<16x32xf32> to vector<16x32xbf16>
    %c0_49 = arith.constant 0 : index
    %c0_50 = arith.constant 0 : index
    %c0_51 = arith.constant 0 : index
    %139 = vector.load %arg9[%c0_49, %c0_50, %c0_51] : memref<1x32x64xbf16, #tpu.memory_space<vmem>>, vector<1x32x64xbf16>
    %140 = vector.shape_cast %139 : vector<1x32x64xbf16> to vector<32x64xbf16>
    %cst_52 = arith.constant dense<0.000000e+00> : vector<16x64xf32>
    %141 = tpu.matmul %138, %140, %cst_52 {dimension_numbers = #tpu.dot_dimension_numbers<[1], [0], [0], [1], [0, 0, 1, 1], [], []>} : vector<16x32xbf16>, vector<32x64xbf16>, vector<16x64xf32> -> vector<16x64xf32>
    %c0_53 = arith.constant 0 : index
    %c0_54 = arith.constant 0 : index
    %c0_55 = arith.constant 0 : index
    %142 = vector.load %arg10[%c0_53, %c0_54, %c0_55] : memref<1x1x64xf32, #tpu.memory_space<vmem>>, vector<1x1x64xf32>
    %143 = vector.shape_cast %142 : vector<1x1x64xf32> to vector<1x64xf32>
    %144 = vector.broadcast %143 : vector<1x64xf32> to vector<16x64xf32>
    %145 = arith.addf %141, %144 : vector<16x64xf32>
    %cst_56 = arith.constant 0.000000e+00 : f32
    %146 = vector.broadcast %cst_56 : f32 to vector<16x64xf32>
    %147 = arith.maximumf %145, %146 : vector<16x64xf32>
    %148 = arith.truncf %147 : vector<16x64xf32> to vector<16x64xbf16>
    %c0_57 = arith.constant 0 : index
    %c0_58 = arith.constant 0 : index
    %c0_59 = arith.constant 0 : index
    %149 = vector.load %arg11[%c0_57, %c0_58, %c0_59] : memref<1x64x32xbf16, #tpu.memory_space<vmem>>, vector<1x64x32xbf16>
    %150 = vector.shape_cast %149 : vector<1x64x32xbf16> to vector<64x32xbf16>
    %cst_60 = arith.constant dense<0.000000e+00> : vector<16x32xf32>
    %151 = tpu.matmul %148, %150, %cst_60 {dimension_numbers = #tpu.dot_dimension_numbers<[1], [0], [0], [1], [0, 0, 1, 1], [], []>} : vector<16x64xbf16>, vector<64x32xbf16>, vector<16x32xf32> -> vector<16x32xf32>
    %c0_61 = arith.constant 0 : index
    %c0_62 = arith.constant 0 : index
    %c0_63 = arith.constant 0 : index
    %152 = vector.load %arg12[%c0_61, %c0_62, %c0_63] : memref<1x1x32xf32, #tpu.memory_space<vmem>>, vector<1x1x32xf32>
    %153 = vector.shape_cast %152 : vector<1x1x32xf32> to vector<1x32xf32>
    %154 = vector.broadcast %153 : vector<1x32xf32> to vector<16x32xf32>
    %155 = arith.addf %151, %154 : vector<16x32xf32>
    %156 = arith.addf %155, %137 : vector<16x32xf32>
    %cst_64 = arith.constant dense<0.000000e+00> : vector<16xf32>
    %157 = vector.multi_reduction <add>, %156, %cst_64 [1] : vector<16x32xf32> to vector<16xf32>
    %158 = vector.shape_cast %157 : vector<16xf32> to vector<16x1xf32>
    %cst_65 = arith.constant 3.200000e+01 : f32
    %159 = vector.broadcast %cst_65 : f32 to vector<16x1xf32>
    %160 = arith.divf %158, %159 : vector<16x1xf32>
    %161 = vector.broadcast %160 : vector<16x1xf32> to vector<16x32xf32>
    %162 = arith.subf %156, %161 : vector<16x32xf32>
    %163 = arith.mulf %162, %162 : vector<16x32xf32>
    %cst_66 = arith.constant dense<0.000000e+00> : vector<16xf32>
    %164 = vector.multi_reduction <add>, %163, %cst_66 [1] : vector<16x32xf32> to vector<16xf32>
    %165 = vector.shape_cast %164 : vector<16xf32> to vector<16x1xf32>
    %cst_67 = arith.constant 3.200000e+01 : f32
    %166 = vector.broadcast %cst_67 : f32 to vector<16x1xf32>
    %167 = arith.divf %165, %166 : vector<16x1xf32>
    %168 = vector.broadcast %160 : vector<16x1xf32> to vector<16x32xf32>
    %169 = arith.subf %156, %168 : vector<16x32xf32>
    %cst_68 = arith.constant 9.99999974E-6 : f32
    %170 = vector.broadcast %cst_68 : f32 to vector<16x1xf32>
    %171 = arith.addf %167, %170 : vector<16x1xf32>
    %172 = math.rsqrt %171 : vector<16x1xf32>
    %173 = vector.broadcast %172 : vector<16x1xf32> to vector<16x32xf32>
    %174 = arith.mulf %169, %173 : vector<16x32xf32>
    %c0_69 = arith.constant 0 : index
    %c0_70 = arith.constant 0 : index
    %c0_71 = arith.constant 0 : index
    %175 = vector.load %arg13[%c0_69, %c0_70, %c0_71] : memref<1x1x32xf32, #tpu.memory_space<vmem>>, vector<1x1x32xf32>
    %176 = vector.shape_cast %175 : vector<1x1x32xf32> to vector<1x32xf32>
    %177 = vector.broadcast %176 : vector<1x32xf32> to vector<16x32xf32>
    %178 = arith.mulf %174, %177 : vector<16x32xf32>
    %c0_72 = arith.constant 0 : index
    %c0_73 = arith.constant 0 : index
    %c0_74 = arith.constant 0 : index
    %179 = vector.load %arg14[%c0_72, %c0_73, %c0_74] : memref<1x1x32xf32, #tpu.memory_space<vmem>>, vector<1x1x32xf32>
    %180 = vector.shape_cast %179 : vector<1x1x32xf32> to vector<1x32xf32>
    %181 = vector.broadcast %180 : vector<1x32xf32> to vector<16x32xf32>
    %182 = arith.addf %178, %181 : vector<16x32xf32>
    %c0_75 = arith.constant 0 : index
    %c0_76 = arith.constant 0 : index
    %183 = vector.load %arg16[%c0_75, %c0_76] : memref<16x32xf32, #tpu.memory_space<vmem>>, vector<16x32xf32>
    tpu.vector_store %arg16[%c0_75, %c0_76], %182 {strides = array<i32>} : memref<16x32xf32, #tpu.memory_space<vmem>>, vector<16x32xf32>,
    %c1_i32 = arith.constant 1 : i32
    %184 = arith.cmpi eq, %arg1, %c1_i32 : i32
    %185 = arith.extui %184 : i1 to i32
    %c0_i32_77 = arith.constant 0 : i32
    %186 = arith.cmpi ne, %185, %c0_i32_77 : i32
    scf.if %186 {
      %187 = vector.shape_cast %182 : vector<16x32xf32> to vector<2x8x32xf32>
      %c0_78 = arith.constant 0 : index
      %c0_79 = arith.constant 0 : index
      %c0_80 = arith.constant 0 : index
      %188 = vector.load %arg15[%c0_78, %c0_79, %c0_80] : memref<2x8x32xf32, #tpu.memory_space<vmem>>, vector<2x8x32xf32>
      tpu.vector_store %arg15[%c0_78, %c0_79, %c0_80], %187 {strides = array<i32>} : memref<2x8x32xf32, #tpu.memory_space<vmem>>, vector<2x8x32xf32>,
    } else {
    }
    return
  }
  func.func @transform_0(%arg0: i32, %arg1: i32) -> (i32, i32, i32) {
    %c0_i32 = arith.constant 0 : i32
    %c0_i32_0 = arith.constant 0 : i32
    %c0_i32_1 = arith.constant 0 : i32
    return %arg0, %c0_i32, %c0_i32_0 : i32, i32, i32
  }
  func.func @transform_1(%arg0: i32, %arg1: i32) -> (i32, i32) {
    %c0_i32 = arith.constant 0 : i32
    %c0_i32_0 = arith.constant 0 : i32
    %c0_i32_1 = arith.constant 0 : i32
    return %c0_i32, %c0_i32_0 : i32, i32
  }
  func.func @transform_2(%arg0: i32, %arg1: i32) -> (i32, i32, i32) {
    %c0_i32 = arith.constant 0 : i32
    %c0_i32_0 = arith.constant 0 : i32
    %c0_i32_1 = arith.constant 0 : i32
    return %arg1, %c0_i32, %c0_i32_0 : i32, i32, i32
  }
  func.func @transform_3(%arg0: i32, %arg1: i32) -> (i32, i32, i32) {
    %c0_i32 = arith.constant 0 : i32
    %c0_i32_0 = arith.constant 0 : i32
    %c0_i32_1 = arith.constant 0 : i32
    return %arg1, %c0_i32, %c0_i32_0 : i32, i32, i32
  }
  func.func @transform_4(%arg0: i32, %arg1: i32) -> (i32, i32, i32) {
    %c0_i32 = arith.constant 0 : i32
    %c0_i32_0 = arith.constant 0 : i32
    %c0_i32_1 = arith.constant 0 : i32
    return %arg1, %c0_i32, %c0_i32_0 : i32, i32, i32
  }
  func.func @transform_5(%arg0: i32, %arg1: i32) -> (i32, i32, i32) {
    %c0_i32 = arith.constant 0 : i32
    %c0_i32_0 = arith.constant 0 : i32
    %c0_i32_1 = arith.constant 0 : i32
    return %arg1, %c0_i32, %c0_i32_0 : i32, i32, i32
  }
  func.func @transform_6(%arg0: i32, %arg1: i32) -> (i32, i32, i32) {
    %c0_i32 = arith.constant 0 : i32
    %c0_i32_0 = arith.constant 0 : i32
    %c0_i32_1 = arith.constant 0 : i32
    return %arg1, %c0_i32, %c0_i32_0 : i32, i32, i32
  }
  func.func @transform_7(%arg0: i32, %arg1: i32) -> (i32, i32, i32) {
    %c0_i32 = arith.constant 0 : i32
    %c0_i32_0 = arith.constant 0 : i32
    %c0_i32_1 = arith.constant 0 : i32
    return %arg1, %c0_i32, %c0_i32_0 : i32, i32, i32
  }
  func.func @transform_8(%arg0: i32, %arg1: i32) -> (i32, i32, i32) {
    %c0_i32 = arith.constant 0 : i32
    %c0_i32_0 = arith.constant 0 : i32
    %c0_i32_1 = arith.constant 0 : i32
    return %arg1, %c0_i32, %c0_i32_0 : i32, i32, i32
  }
  func.func @transform_9(%arg0: i32, %arg1: i32) -> (i32, i32, i32) {
    %c0_i32 = arith.constant 0 : i32
    %c0_i32_0 = arith.constant 0 : i32
    %c0_i32_1 = arith.constant 0 : i32
    return %arg1, %c0_i32, %c0_i32_0 : i32, i32, i32
  }
  func.func @transform_10(%arg0: i32, %arg1: i32) -> (i32, i32, i32) {
    %c0_i32 = arith.constant 0 : i32
    %c0_i32_0 = arith.constant 0 : i32
    %c0_i32_1 = arith.constant 0 : i32
    return %arg1, %c0_i32, %c0_i32_0 : i32, i32, i32
  }
  func.func @transform_11(%arg0: i32, %arg1: i32) -> (i32, i32, i32) {
    %c0_i32 = arith.constant 0 : i32
    %c0_i32_0 = arith.constant 0 : i32
    %c0_i32_1 = arith.constant 0 : i32
    return %arg1, %c0_i32, %c0_i32_0 : i32, i32, i32
  }
  func.func @transform_12(%arg0: i32, %arg1: i32) -> (i32, i32, i32) {
    %c0_i32 = arith.constant 0 : i32
    %c0_i32_0 = arith.constant 0 : i32
    %c0_i32_1 = arith.constant 0 : i32
    return %arg1, %c0_i32, %c0_i32_0 : i32, i32, i32
  }
  func.func @transform_13(%arg0: i32, %arg1: i32) -> (i32, i32, i32) {
    %c0_i32 = arith.constant 0 : i32
    %c0_i32_0 = arith.constant 0 : i32
    %c0_i32_1 = arith.constant 0 : i32
    return %arg0, %c0_i32, %c0_i32_0 : i32, i32, i32
  }
}

</mosaic_0001>

<llo_original>
// kernel: tpu_custom_call.1
$region0: #{tpu_custom_call.1}
  #allocation0 [shape = 'u32[]', space=smem, size = 0x4, offset = 0x4, fixed_abs, tag = 'smem constant byte address 0x4 - core index']
  #allocation1 [shape = 'u32[144,128]{1,0:T(1,128)}', space=vmem, size = 0x12000, scoped, tag = 'internal scratch']
  #allocation2 [shape = 'f32[16,32]{1,0:T(8,128)}', space=vmem, size = 0x2000, scoped, tag = 'scratch operand']
  %s0 = inlined_call_operand.hbm [shape: f32[2,8,32], index: 0, kind: input, shape index: {}]
  %s1 = inlined_call_operand.hbm [shape: f32[16,16], index: 1, kind: input, shape index: {}]
  %s2 = inlined_call_operand.vmem [shape: bf16[2,32,32], index: 2, kind: input, shape index: {}]
  %s3 = inlined_call_operand.vmem [shape: bf16[2,32,32], index: 3, kind: input, shape index: {}]
  %s4 = inlined_call_operand.vmem [shape: bf16[2,32,32], index: 4, kind: input, shape index: {}]
  %s5 = inlined_call_operand.vmem [shape: f32[2,1,32], index: 5, kind: input, shape index: {}]
  %s6 = inlined_call_operand.hbm [shape: f32[2,1,32], index: 6, kind: input, shape index: {}]
  %s7 = inlined_call_operand.hbm [shape: bf16[2,32,64], index: 7, kind: input, shape index: {}]
  %s8 = inlined_call_operand.hbm [shape: f32[2,1,64], index: 8, kind: input, shape index: {}]
  %s9 = inlined_call_operand.vmem [shape: bf16[2,64,32], index: 9, kind: input, shape index: {}]
  %s10 = inlined_call_operand.vmem [shape: f32[2,1,32], index: 10, kind: input, shape index: {}]
  %s11 = inlined_call_operand.vmem [shape: f32[2,1,32], index: 11, kind: input, shape index: {}]
  %s12 = inlined_call_operand.vmem [shape: f32[2,1,32], index: 12, kind: input, shape index: {}]
  %s13 = inlined_call_operand.hbm [shape: f32[2,8,32], index: 13, kind: output, shape index: {}]
  %s14 = sld [smem:[#allocation0]]
  $region113: #{tpu_custom_call.1} parent=0
    _
  %s16 = ssub.s32 1, %s14
  %s17 = scalar_select 0, %s16, %s14
  $region1: #{tpu_custom_call.1} parent=0
    #allocation3 [shape = 'u8[8192]{0}', space=vmem, size = 0x2000, scoped, tag = 'input window, operand 0, single buffered']
    #allocation4 [shape = 's32[2]{0}', space=sflag, size = 0x8, scoped, tag = 'scoped memory for tpu_custom_call.1']
    #allocation5 [shape = 's32[2]{0}', space=sflag, size = 0x8, scoped, tag = 'scoped memory for tpu_custom_call.1']
    #allocation6 [shape = 'u8[8192]{0}', space=vmem, size = 0x2000, scoped, tag = 'input window, operand 1, single buffered']
    #allocation7 [shape = 's32[1]{0}', space=sflag, size = 0x4, scoped, tag = 'scoped memory for tpu_custom_call.1']
    #allocation8 [shape = 'u8[1024]{0}', space=vmem, size = 0x400, scoped, tag = 'input window, operand 6']
    #allocation9 [shape = 'u8[16384]{0}', space=vmem, size = 0x4000, scoped, tag = 'input window, operand 7']
    #allocation10 [shape = 'u8[1024]{0}', space=vmem, size = 0x400, scoped, tag = 'input window, operand 8']
    #allocation11 [shape = 'u8[8192]{0}', space=vmem, size = 0x2000, scoped, tag = 'output window, operand 0, single buffered']
    %18 = vsyncpa [#allocation4], 0
    %19 = vsyncpa [#allocation7], 0
    %20 = vsyncpa [#allocation5], 0
    loop: start=0, step=1, limit=4
    $region2: #{tpu_custom_call.1} parent=1 // loop_pre_header
      _
    $region3: #{tpu_custom_call.1} parent=1 // loop_header
      %s22 = sphi 0, %s26
      %p23 = scmp.ge.s32.totalorder %s22, 4
      %s29 = sphi 0, %s41
      %s30 = sphi 0, %s37
      %s31 = sphi 0, %s29
      %s32 = sphi 0, %s30
      %s33 = sphi 0, %s31
      %s34 = sphi 0, %s32
      %s44 = sphi 0, %s46
      %s47 = sphi 0, %s44
      %s48 = sphi 0, %s47
      %s64 = sphi 0, %s48
      %s68 = sphi 0, %s68
      %s70 = sphi 0, %s68
      %s71 = sphi 0, %s70
      %s85 = sphi 0, %s71
      %s91 = sphi 0, %s93
      %s94 = sphi 0, %s91
      %s95 = sphi 0, %s94
      %s111 = sphi 0, %s95
      %s117 = sphi 0, %s119
      %s120 = sphi 0, %s117
      %s121 = sphi 0, %s120
      %s137 = sphi 0, %s121
      %s143 = sphi 0, %s145
      %s146 = sphi 0, %s143
      %s147 = sphi 0, %s146
      %s163 = sphi 0, %s147
      %s169 = sphi 0, %s171
      %s172 = sphi 0, %s169
      %s173 = sphi 0, %s172
      %s189 = sphi 0, %s173
      %s195 = sphi 0, %s197
      %s198 = sphi 0, %s195
      %s199 = sphi 0, %s198
      %s215 = sphi 0, %s199
      %s221 = sphi 0, %s223
      %s224 = sphi 0, %s221
      %s225 = sphi 0, %s224
      %s241 = sphi 0, %s225
      %s247 = sphi 0, %s249
      %s250 = sphi 0, %s247
      %s251 = sphi 0, %s250
      %s267 = sphi 0, %s251
      %s273 = sphi 0, %s275
      %s276 = sphi 0, %s273
      %s277 = sphi 0, %s276
      %s293 = sphi 0, %s277
      %s299 = sphi 0, %s301
      %s302 = sphi 0, %s299
      %s303 = sphi 0, %s302
      %s319 = sphi 0, %s303
      %s325 = sphi 0, %s327
      %s328 = sphi 0, %s325
      %s329 = sphi 0, %s328
      %s345 = sphi 0, %s329
      %s351 = sphi 0, %s353
      %s354 = sphi 0, %s351
      %s355 = sphi 0, %s354
      %s371 = sphi 0, %s355
      %s377 = sphi 0, %s379
      %s380 = sphi 0, %s377
      %s381 = sphi 0, %s380
      %s397 = sphi 0, %s381
    $region4: #{tpu_custom_call.1} parent=1 // loop_header_branch
      %25 = sbr.rel (%p23) target = $region8
    $region5: #{tpu_custom_call.1} parent=1 // loop_body
      %s27 = ssub.s32 %s22, 1
      %s28 = ssub.s32 %s22, 2
      %s35 = sadd.s32 1, %s30
      %p36 = scmp.ge.s32.totalorder %s35, 2
      %s37 = scalar_select %p36, 0, %s35
      %s38 = sadd.s32 1, %s29
      %s39 = scalar_select %p36, %s38, %s29
      %p40 = scmp.ge.s32.totalorder %s39, 1
      %s41 = scalar_select %p40, 0, %s39
      %s42 = ssub.s32 %s29, %s41
      %p43 = scmp.eq.s32.totalorder %s42, 0
      %s45 = sadd.s32 %s44, 1
      %s46 = scalar_select %p43, %s44, %s45
      %p49 = pneg %p43
      %p50 = scmp.eq.s32.totalorder %s22, 1
      %p51 = por %p49, %p50
      %p52 = scmp.ne.s32.totalorder %s44, %s47
      %p53 = scmp.eq.s32.totalorder %s22, 0
      %p54 = por %p52, %p53
      %p55 = scmp.ne.s32.totalorder %s44, %s47
      %p56 = scmp.eq.s32.totalorder %s27, 1
      %p57 = por %p55, %p56
      %p58 = scmp.ne.s32.totalorder %s47, %s48
      %p59 = scmp.eq.s32.totalorder %s27, 0
      %p60 = por %p58, %p59
      %p61 = scmp.ne.s32.totalorder %s47, %s48
      %p62 = scmp.eq.s32.totalorder %s28, 1
      %p63 = por %p61, %p62
      %p65 = scmp.ne.s32.totalorder %s48, %s64
      %p66 = scmp.eq.s32.totalorder %s28, 0
      %p67 = por %p65, %p66
      %s69 = sadd.s32 %s68, 1
      %p72 = scmp.eq.s32.totalorder %s22, 1
      %p73 = scmp.ne.s32.totalorder %s68, %s70
      %p74 = scmp.eq.s32.totalorder %s22, 0
      %p75 = por %p73, %p74
      %p76 = scmp.ne.s32.totalorder %s68, %s70
      %p77 = scmp.eq.s32.totalorder %s27, 1
      %p78 = por %p76, %p77
      %p79 = scmp.ne.s32.totalorder %s70, %s71
      %p80 = scmp.eq.s32.totalorder %s27, 0
      %p81 = por %p79, %p80
      %p82 = scmp.ne.s32.totalorder %s70, %s71
      %p83 = scmp.eq.s32.totalorder %s28, 1
      %p84 = por %p82, %p83
      %p86 = scmp.ne.s32.totalorder %s71, %s85
      %p87 = scmp.eq.s32.totalorder %s28, 0
      %p88 = por %p86, %p87
      %s89 = ssub.s32 %s30, %s37
      %p90 = scmp.eq.s32.totalorder %s89, 0
      %s92 = sadd.s32 %s91, 1
      %s93 = scalar_select %p90, %s91, %s92
      %p96 = pneg %p90
      %p97 = scmp.eq.s32.totalorder %s22, 1
      %p98 = por %p96, %p97
      %p99 = scmp.ne.s32.totalorder %s91, %s94
      %p100 = scmp.eq.s32.totalorder %s22, 0
      %p101 = por %p99, %p100
      %p102 = scmp.ne.s32.totalorder %s91, %s94
      %p103 = scmp.eq.s32.totalorder %s27, 1
      %p104 = por %p102, %p103
      %p105 = scmp.ne.s32.totalorder %s94, %s95
      %p106 = scmp.eq.s32.totalorder %s27, 0
      %p107 = por %p105, %p106
      %p108 = scmp.ne.s32.totalorder %s94, %s95
      %p109 = scmp.eq.s32.totalorder %s28, 1
      %p110 = por %p108, %p109
      %p112 = scmp.ne.s32.totalorder %s95, %s111
      %p113 = scmp.eq.s32.totalorder %s28, 0
      %p114 = por %p112, %p113
      %s115 = ssub.s32 %s30, %s37
      %p116 = scmp.eq.s32.totalorder %s115, 0
      %s118 = sadd.s32 %s117, 1
      %s119 = scalar_select %p116, %s117, %s118
      %p122 = pneg %p116
      %p123 = scmp.eq.s32.totalorder %s22, 1
      %p124 = por %p122, %p123
      %p125 = scmp.ne.s32.totalorder %s117, %s120
      %p126 = scmp.eq.s32.totalorder %s22, 0
      %p127 = por %p125, %p126
      %p128 = scmp.ne.s32.totalorder %s117, %s120
      %p129 = scmp.eq.s32.totalorder %s27, 1
      %p130 = por %p128, %p129
      %p131 = scmp.ne.s32.totalorder %s120, %s121
      %p132 = scmp.eq.s32.totalorder %s27, 0
      %p133 = por %p131, %p132
      %p134 = scmp.ne.s32.totalorder %s120, %s121
      %p135 = scmp.eq.s32.totalorder %s28, 1
      %p136 = por %p134, %p135
      %p138 = scmp.ne.s32.totalorder %s121, %s137
      %p139 = scmp.eq.s32.totalorder %s28, 0
      %p140 = por %p138, %p139
      %s141 = ssub.s32 %s30, %s37
      %p142 = scmp.eq.s32.totalorder %s141, 0
      %s144 = sadd.s32 %s143, 1
      %s145 = scalar_select %p142, %s143, %s144
      %p148 = pneg %p142
      %p149 = scmp.eq.s32.totalorder %s22, 1
      %p150 = por %p148, %p149
      %p151 = scmp.ne.s32.totalorder %s143, %s146
      %p152 = scmp.eq.s32.totalorder %s22, 0
      %p153 = por %p151, %p152
      %p154 = scmp.ne.s32.totalorder %s143, %s146
      %p155 = scmp.eq.s32.totalorder %s27, 1
      %p156 = por %p154, %p155
      %p157 = scmp.ne.s32.totalorder %s146, %s147
      %p158 = scmp.eq.s32.totalorder %s27, 0
      %p159 = por %p157, %p158
      %p160 = scmp.ne.s32.totalorder %s146, %s147
      %p161 = scmp.eq.s32.totalorder %s28, 1
      %p162 = por %p160, %p161
      %p164 = scmp.ne.s32.totalorder %s147, %s163
      %p165 = scmp.eq.s32.totalorder %s28, 0
      %p166 = por %p164, %p165
      %s167 = ssub.s32 %s30, %s37
      %p168 = scmp.eq.s32.totalorder %s167, 0
      %s170 = sadd.s32 %s169, 1
      %s171 = scalar_select %p168, %s169, %s170
      %p174 = pneg %p168
      %p175 = scmp.eq.s32.totalorder %s22, 1
      %p176 = por %p174, %p175
      %p177 = scmp.ne.s32.totalorder %s169, %s172
      %p178 = scmp.eq.s32.totalorder %s22, 0
      %p179 = por %p177, %p178
      %p180 = scmp.ne.s32.totalorder %s169, %s172
      %p181 = scmp.eq.s32.totalorder %s27, 1
      %p182 = por %p180, %p181
      %p183 = scmp.ne.s32.totalorder %s172, %s173
      %p184 = scmp.eq.s32.totalorder %s27, 0
      %p185 = por %p183, %p184
      %p186 = scmp.ne.s32.totalorder %s172, %s173
      %p187 = scmp.eq.s32.totalorder %s28, 1
      %p188 = por %p186, %p187
      %p190 = scmp.ne.s32.totalorder %s173, %s189
      %p191 = scmp.eq.s32.totalorder %s28, 0
      %p192 = por %p190, %p191
      %s193 = ssub.s32 %s30, %s37
      %p194 = scmp.eq.s32.totalorder %s193, 0
      %s196 = sadd.s32 %s195, 1
      %s197 = scalar_select %p194, %s195, %s196
      %p200 = pneg %p194
      %p201 = scmp.eq.s32.totalorder %s22, 1
      %p202 = por %p200, %p201
      %p203 = scmp.ne.s32.totalorder %s195, %s198
      %p204 = scmp.eq.s32.totalorder %s22, 0
      %p205 = por %p203, %p204
      %p206 = scmp.ne.s32.totalorder %s195, %s198
      %p207 = scmp.eq.s32.totalorder %s27, 1
      %p208 = por %p206, %p207
      %p209 = scmp.ne.s32.totalorder %s198, %s199
      %p210 = scmp.eq.s32.totalorder %s27, 0
      %p211 = por %p209, %p210
      %p212 = scmp.ne.s32.totalorder %s198, %s199
      %p213 = scmp.eq.s32.totalorder %s28, 1
      %p214 = por %p212, %p213
      %p216 = scmp.ne.s32.totalorder %s199, %s215
      %p217 = scmp.eq.s32.totalorder %s28, 0
      %p218 = por %p216, %p217
      %s219 = ssub.s32 %s30, %s37
      %p220 = scmp.eq.s32.totalorder %s219, 0
      %s222 = sadd.s32 %s221, 1
      %s223 = scalar_select %p220, %s221, %s222
      %p226 = pneg %p220
      %p227 = scmp.eq.s32.totalorder %s22, 1
      %p228 = por %p226, %p227
      %p229 = scmp.ne.s32.totalorder %s221, %s224
      %p230 = scmp.eq.s32.totalorder %s22, 0
      %p231 = por %p229, %p230
      %p232 = scmp.ne.s32.totalorder %s221, %s224
      %p233 = scmp.eq.s32.totalorder %s27, 1
      %p234 = por %p232, %p233
      %p235 = scmp.ne.s32.totalorder %s224, %s225
      %p236 = scmp.eq.s32.totalorder %s27, 0
      %p237 = por %p235, %p236
      %p238 = scmp.ne.s32.totalorder %s224, %s225
      %p239 = scmp.eq.s32.totalorder %s28, 1
      %p240 = por %p238, %p239
      %p242 = scmp.ne.s32.totalorder %s225, %s241
      %p243 = scmp.eq.s32.totalorder %s28, 0
      %p244 = por %p242, %p243
      %s245 = ssub.s32 %s30, %s37
      %p246 = scmp.eq.s32.totalorder %s245, 0
      %s248 = sadd.s32 %s247, 1
      %s249 = scalar_select %p246, %s247, %s248
      %p252 = pneg %p246
      %p253 = scmp.eq.s32.totalorder %s22, 1
      %p254 = por %p252, %p253
      %p255 = scmp.ne.s32.totalorder %s247, %s250
      %p256 = scmp.eq.s32.totalorder %s22, 0
      %p257 = por %p255, %p256
      %p258 = scmp.ne.s32.totalorder %s247, %s250
      %p259 = scmp.eq.s32.totalorder %s27, 1
      %p260 = por %p258, %p259
      %p261 = scmp.ne.s32.totalorder %s250, %s251
      %p262 = scmp.eq.s32.totalorder %s27, 0
      %p263 = por %p261, %p262
      %p264 = scmp.ne.s32.totalorder %s250, %s251
      %p265 = scmp.eq.s32.totalorder %s28, 1
      %p266 = por %p264, %p265
      %p268 = scmp.ne.s32.totalorder %s251, %s267
      %p269 = scmp.eq.s32.totalorder %s28, 0
      %p270 = por %p268, %p269
      %s271 = ssub.s32 %s30, %s37
      %p272 = scmp.eq.s32.totalorder %s271, 0
      %s274 = sadd.s32 %s273, 1
      %s275 = scalar_select %p272, %s273, %s274
      %p278 = pneg %p272
      %p279 = scmp.eq.s32.totalorder %s22, 1
      %p280 = por %p278, %p279
      %p281 = scmp.ne.s32.totalorder %s273, %s276
      %p282 = scmp.eq.s32.totalorder %s22, 0
      %p283 = por %p281, %p282
      %p284 = scmp.ne.s32.totalorder %s273, %s276
      %p285 = scmp.eq.s32.totalorder %s27, 1
      %p286 = por %p284, %p285
      %p287 = scmp.ne.s32.totalorder %s276, %s277
      %p288 = scmp.eq.s32.totalorder %s27, 0
      %p289 = por %p287, %p288
      %p290 = scmp.ne.s32.totalorder %s276, %s277
      %p291 = scmp.eq.s32.totalorder %s28, 1
      %p292 = por %p290, %p291
      %p294 = scmp.ne.s32.totalorder %s277, %s293
      %p295 = scmp.eq.s32.totalorder %s28, 0
      %p296 = por %p294, %p295
      %s297 = ssub.s32 %s30, %s37
      %p298 = scmp.eq.s32.totalorder %s297, 0
      %s300 = sadd.s32 %s299, 1
      %s301 = scalar_select %p298, %s299, %s300
      %p304 = pneg %p298
      %p305 = scmp.eq.s32.totalorder %s22, 1
      %p306 = por %p304, %p305
      %p307 = scmp.ne.s32.totalorder %s299, %s302
      %p308 = scmp.eq.s32.totalorder %s22, 0
      %p309 = por %p307, %p308
      %p310 = scmp.ne.s32.totalorder %s299, %s302
      %p311 = scmp.eq.s32.totalorder %s27, 1
      %p312 = por %p310, %p311
      %p313 = scmp.ne.s32.totalorder %s302, %s303
      %p314 = scmp.eq.s32.totalorder %s27, 0
      %p315 = por %p313, %p314
      %p316 = scmp.ne.s32.totalorder %s302, %s303
      %p317 = scmp.eq.s32.totalorder %s28, 1
      %p318 = por %p316, %p317
      %p320 = scmp.ne.s32.totalorder %s303, %s319
      %p321 = scmp.eq.s32.totalorder %s28, 0
      %p322 = por %p320, %p321
      %s323 = ssub.s32 %s30, %s37
      %p324 = scmp.eq.s32.totalorder %s323, 0
      %s326 = sadd.s32 %s325, 1
      %s327 = scalar_select %p324, %s325, %s326
      %p330 = pneg %p324
      %p331 = scmp.eq.s32.totalorder %s22, 1
      %p332 = por %p330, %p331
      %p333 = scmp.ne.s32.totalorder %s325, %s328
      %p334 = scmp.eq.s32.totalorder %s22, 0
      %p335 = por %p333, %p334
      %p336 = scmp.ne.s32.totalorder %s325, %s328
      %p337 = scmp.eq.s32.totalorder %s27, 1
      %p338 = por %p336, %p337
      %p339 = scmp.ne.s32.totalorder %s328, %s329
      %p340 = scmp.eq.s32.totalorder %s27, 0
      %p341 = por %p339, %p340
      %p342 = scmp.ne.s32.totalorder %s328, %s329
      %p343 = scmp.eq.s32.totalorder %s28, 1
      %p344 = por %p342, %p343
      %p346 = scmp.ne.s32.totalorder %s329, %s345
      %p347 = scmp.eq.s32.totalorder %s28, 0
      %p348 = por %p346, %p347
      %s349 = ssub.s32 %s30, %s37
      %p350 = scmp.eq.s32.totalorder %s349, 0
      %s352 = sadd.s32 %s351, 1
      %s353 = scalar_select %p350, %s351, %s352
      %p356 = pneg %p350
      %p357 = scmp.eq.s32.totalorder %s22, 1
      %p358 = por %p356, %p357
      %p359 = scmp.ne.s32.totalorder %s351, %s354
      %p360 = scmp.eq.s32.totalorder %s22, 0
      %p361 = por %p359, %p360
      %p362 = scmp.ne.s32.totalorder %s351, %s354
      %p363 = scmp.eq.s32.totalorder %s27, 1
      %p364 = por %p362, %p363
      %p365 = scmp.ne.s32.totalorder %s354, %s355
      %p366 = scmp.eq.s32.totalorder %s27, 0
      %p367 = por %p365, %p366
      %p368 = scmp.ne.s32.totalorder %s354, %s355
      %p369 = scmp.eq.s32.totalorder %s28, 1
      %p370 = por %p368, %p369
      %p372 = scmp.ne.s32.totalorder %s355, %s371
      %p373 = scmp.eq.s32.totalorder %s28, 0
      %p374 = por %p372, %p373
      %s375 = ssub.s32 %s29, %s41
      %p376 = scmp.eq.s32.totalorder %s375, 0
      %s378 = sadd.s32 %s377, 1
      %s379 = scalar_select %p376, %s377, %s378
      %p382 = pneg %p376
      %p383 = scmp.eq.s32.totalorder %s22, 1
      %p384 = por %p382, %p383
      %p385 = scmp.ne.s32.totalorder %s377, %s380
      %p386 = scmp.eq.s32.totalorder %s22, 0
      %p387 = por %p385, %p386
      %p388 = scmp.ne.s32.totalorder %s377, %s380
      %p389 = scmp.eq.s32.totalorder %s27, 1
      %p390 = por %p388, %p389
      %p391 = scmp.ne.s32.totalorder %s380, %s381
      %p392 = scmp.eq.s32.totalorder %s27, 0
      %p393 = por %p391, %p392
      %p394 = scmp.ne.s32.totalorder %s380, %s381
      %p395 = scmp.eq.s32.totalorder %s28, 1
      %p396 = por %p394, %p395
      %p398 = scmp.ne.s32.totalorder %s381, %s397
      %p399 = scmp.eq.s32.totalorder %s28, 0
      %p400 = por %p398, %p399
      %p401 = scmp.le.s32.totalorder 1, %s22
      %p402 = scmp.lt.s32.totalorder %s22, 3
      %p403 = pnand %p401, %p402
      %p404 = pneg %p403
      // Predicated region
      $region9: #{tpu_custom_call.1} parent=5 // pred_check
        _
      $region10: #{tpu_custom_call.1} parent=5 // pred_check_branch
        %406 = sbr.rel (%p403) target = $region12
      $region11: #{tpu_custom_call.1} parent=5 // pred_region
        %s407 = ssub.s32 %s22, 1
        // Predicated region
        $region13: #{tpu_custom_call.1} parent=11 // pred_check
          %p408 = pneg %p60
        $region14: #{tpu_custom_call.1} parent=11 // pred_check_branch
          %410 = sbr.rel (%p408) target = $region16
        $region15: #{tpu_custom_call.1} parent=11 // pred_region
          %s411 = smul.u32 2, %s31
          %s413 = ssub.s32 256, 256
          %414 = vsyncadd [#allocation4], %s413
          %s415 = smul.addr %s411, 128
          %s416 = scalar_lea.hbm %s0, %s415
          %s417 = sshll.u32 [#allocation3], 4
          %s418 = int_to_ptr.vmem [resolvable:$true] %s417
          %423 = dma.hbm_to_vmem [thread:$0]  %s416, 256, %s418, [#allocation4], 128, 128, 8
        $region16: #{tpu_custom_call.1} parent=11 // pred_fallthru
          _
        // Predicated region
        $region17: #{tpu_custom_call.1} parent=11 // pred_check
          %p424 = pneg %p81
        $region18: #{tpu_custom_call.1} parent=11 // pred_check_branch
          %426 = sbr.rel (%p424) target = $region20
        $region19: #{tpu_custom_call.1} parent=11 // pred_region
          %s428 = ssub.s32 256, 256
          %429 = vsyncadd [#allocation7], %s428
          %s430 = sshll.u32 [#allocation6], 4
          %s431 = int_to_ptr.vmem [resolvable:$true] %s430
          %436 = dma.hbm_to_vmem [thread:$0]  %s1, 256, %s431, [#allocation7], 128, 128, 8
        $region20: #{tpu_custom_call.1} parent=11 // pred_fallthru
          _
      $region12: #{tpu_custom_call.1} parent=5 // pred_fallthru
        _
      %p437 = scmp.lt.s32.totalorder %s22, 2
      // Predicated region
      $region21: #{tpu_custom_call.1} parent=5 // pred_check
        %p438 = pneg %p437
      $region22: #{tpu_custom_call.1} parent=5 // pred_check_branch
        %440 = sbr.rel (%p438) target = $region24
      $region23: #{tpu_custom_call.1} parent=5 // pred_region
        // Predicated region
        $region25: #{tpu_custom_call.1} parent=23 // pred_check
          %p441 = pneg %p101
        $region26: #{tpu_custom_call.1} parent=23 // pred_check_branch
          %443 = sbr.rel (%p441) target = $region28
        $region27: #{tpu_custom_call.1} parent=23 // pred_region
          %p444 = scmp.lt.s32.totalorder %s30, 1
          %s445 = scalar_select %p444, %s30, 1
          %s446 = smul.addr %s445, 4
          %s447 = smul.addr %s446, 4
          %s448 = scalar_lea.vmem %s2, %s447
        $region28: #{tpu_custom_call.1} parent=23 // pred_fallthru
          _
        // Predicated region
        $region29: #{tpu_custom_call.1} parent=23 // pred_check
          %p449 = pneg %p127
        $region30: #{tpu_custom_call.1} parent=23 // pred_check_branch
          %451 = sbr.rel (%p449) target = $region32
        $region31: #{tpu_custom_call.1} parent=23 // pred_region
          %p452 = scmp.lt.s32.totalorder %s30, 1
          %s453 = scalar_select %p452, %s30, 1
          %s454 = smul.addr %s453, 4
          %s455 = smul.addr %s454, 4
          %s456 = scalar_lea.vmem %s3, %s455
        $region32: #{tpu_custom_call.1} parent=23 // pred_fallthru
          _
        // Predicated region
        $region33: #{tpu_custom_call.1} parent=23 // pred_check
          %p457 = pneg %p153
        $region34: #{tpu_custom_call.1} parent=23 // pred_check_branch
          %459 = sbr.rel (%p457) target = $region36
        $region35: #{tpu_custom_call.1} parent=23 // pred_region
          %p460 = scmp.lt.s32.totalorder %s30, 1
          %s461 = scalar_select %p460, %s30, 1
          %s462 = smul.addr %s461, 4
          %s463 = smul.addr %s462, 4
          %s464 = scalar_lea.vmem %s4, %s463
        $region36: #{tpu_custom_call.1} parent=23 // pred_fallthru
          _
        // Predicated region
        $region37: #{tpu_custom_call.1} parent=23 // pred_check
          %p465 = pneg %p179
        $region38: #{tpu_custom_call.1} parent=23 // pred_check_branch
          %467 = sbr.rel (%p465) target = $region40
        $region39: #{tpu_custom_call.1} parent=23 // pred_region
          %p468 = scmp.lt.s32.totalorder %s30, 1
          %s469 = scalar_select %p468, %s30, 1
          %s470 = scalar_lea.vmem %s5, %s469
        $region40: #{tpu_custom_call.1} parent=23 // pred_fallthru
          _
        // Predicated region
        $region41: #{tpu_custom_call.1} parent=23 // pred_check
          %p471 = pneg %p205
        $region42: #{tpu_custom_call.1} parent=23 // pred_check_branch
          %473 = sbr.rel (%p471) target = $region44
        $region43: #{tpu_custom_call.1} parent=23 // pred_region
          %s474 = sand.u32 %s22, 1
          %s475 = scalar_lea.sflag [#allocation4], %s474
          %s476 = sand.u32 %s195, 1
          %s477 = scalar_lea.vmem [#allocation8], %s476
          %s479 = ssub.s32 16, 16
          %480 = vsyncadd %s475, %s479
          %s481 = smul.addr %s30, 16
          %s482 = scalar_lea.hbm %s6, %s481
          %s484 = sshll.u32 %s477, 4
          %s485 = int_to_ptr.vmem [resolvable:$true] %s484
          %487 = dma.hbm_to_vmem [thread:$0]  %s482, 16, %s485, %s475
        $region44: #{tpu_custom_call.1} parent=23 // pred_fallthru
          _
        // Predicated region
        $region45: #{tpu_custom_call.1} parent=23 // pred_check
          %p488 = pneg %p231
        $region46: #{tpu_custom_call.1} parent=23 // pred_check_branch
          %490 = sbr.rel (%p488) target = $region48
        $region47: #{tpu_custom_call.1} parent=23 // pred_region
          %s491 = sand.u32 %s22, 1
          %s492 = scalar_lea.sflag [#allocation4], %s491
          %s493 = sand.u32 %s221, 1
          %s494 = smul.addr %s493, 16
          %s495 = scalar_lea.vmem [#allocation9], %s494
          %s497 = ssub.s32 256, 256
          %498 = vsyncadd %s492, %s497
          %s499 = smul.addr %s30, 4
          %s500 = smul.addr %s499, 64
          %s501 = scalar_lea.hbm %s7, %s500
          %s502 = sshll.u32 %s495, 4
          %s503 = int_to_ptr.vmem [resolvable:$true] %s502
          %508 = dma.hbm_to_vmem [thread:$0]  %s501, 256, %s503, %s492, 64, 64, 4
        $region48: #{tpu_custom_call.1} parent=23 // pred_fallthru
          _
        // Predicated region
        $region49: #{tpu_custom_call.1} parent=23 // pred_check
          %p509 = pneg %p257
        $region50: #{tpu_custom_call.1} parent=23 // pred_check_branch
          %511 = sbr.rel (%p509) target = $region52
        $region51: #{tpu_custom_call.1} parent=23 // pred_region
          %s512 = sand.u32 %s22, 1
          %s513 = scalar_lea.sflag [#allocation4], %s512
          %s514 = sand.u32 %s247, 1
          %s515 = scalar_lea.vmem [#allocation10], %s514
          %s517 = ssub.s32 16, 16
          %518 = vsyncadd %s513, %s517
          %s519 = smul.addr %s30, 16
          %s520 = scalar_lea.hbm %s8, %s519
          %s522 = sshll.u32 %s515, 4
          %s523 = int_to_ptr.vmem [resolvable:$true] %s522
          %525 = dma.hbm_to_vmem [thread:$0]  %s520, 16, %s523, %s513
        $region52: #{tpu_custom_call.1} parent=23 // pred_fallthru
          _
        // Predicated region
        $region53: #{tpu_custom_call.1} parent=23 // pred_check
          %p526 = pneg %p283
        $region54: #{tpu_custom_call.1} parent=23 // pred_check_branch
          %528 = sbr.rel (%p526) target = $region56
        $region55: #{tpu_custom_call.1} parent=23 // pred_region
          %p529 = scmp.lt.s32.totalorder %s30, 1
          %s530 = scalar_select %p529, %s30, 1
          %s531 = smul.addr %s530, 8
          %s532 = smul.addr %s531, 4
          %s533 = scalar_lea.vmem %s9, %s532
        $region56: #{tpu_custom_call.1} parent=23 // pred_fallthru
          _
        // Predicated region
        $region57: #{tpu_custom_call.1} parent=23 // pred_check
          %p534 = pneg %p309
        $region58: #{tpu_custom_call.1} parent=23 // pred_check_branch
          %536 = sbr.rel (%p534) target = $region60
        $region59: #{tpu_custom_call.1} parent=23 // pred_region
          %p537 = scmp.lt.s32.totalorder %s30, 1
          %s538 = scalar_select %p537, %s30, 1
          %s539 = scalar_lea.vmem %s10, %s538
        $region60: #{tpu_custom_call.1} parent=23 // pred_fallthru
          _
        // Predicated region
        $region61: #{tpu_custom_call.1} parent=23 // pred_check
          %p540 = pneg %p335
        $region62: #{tpu_custom_call.1} parent=23 // pred_check_branch
          %542 = sbr.rel (%p540) target = $region64
        $region63: #{tpu_custom_call.1} parent=23 // pred_region
          %p543 = scmp.lt.s32.totalorder %s30, 1
          %s544 = scalar_select %p543, %s30, 1
          %s545 = scalar_lea.vmem %s11, %s544
        $region64: #{tpu_custom_call.1} parent=23 // pred_fallthru
          _
        // Predicated region
        $region65: #{tpu_custom_call.1} parent=23 // pred_check
          %p546 = pneg %p361
        $region66: #{tpu_custom_call.1} parent=23 // pred_check_branch
          %548 = sbr.rel (%p546) target = $region68
        $region67: #{tpu_custom_call.1} parent=23 // pred_region
          %p549 = scmp.lt.s32.totalorder %s30, 1
          %s550 = scalar_select %p549, %s30, 1
          %s551 = scalar_lea.vmem %s12, %s550
        $region68: #{tpu_custom_call.1} parent=23 // pred_fallthru
          _
      $region24: #{tpu_custom_call.1} parent=5 // pred_fallthru
        _
      %p552 = scmp.le.s32.totalorder 1, %s22
      %p553 = scmp.lt.s32.totalorder %s22, 3
      %p554 = pnand %p552, %p553
      %p555 = pneg %p554
      // Predicated region
      $region69: #{tpu_custom_call.1} parent=5 // pred_check
        _
      $region70: #{tpu_custom_call.1} parent=5 // pred_check_branch
        %557 = sbr.rel (%p554) target = $region72
      $region71: #{tpu_custom_call.1} parent=5 // pred_region
        %s558 = ssub.s32 %s22, 1
        // Predicated region
        $region73: #{tpu_custom_call.1} parent=71 // pred_check
          %p559 = pneg %p60
        $region74: #{tpu_custom_call.1} parent=71 // pred_check_branch
          %561 = sbr.rel (%p559) target = $region76
        $region75: #{tpu_custom_call.1} parent=71 // pred_region
          %562 = dma.done [#allocation4], 256
        $region76: #{tpu_custom_call.1} parent=71 // pred_fallthru
          _
        // Predicated region
        $region77: #{tpu_custom_call.1} parent=71 // pred_check
          %p563 = pneg %p81
        $region78: #{tpu_custom_call.1} parent=71 // pred_check_branch
          %565 = sbr.rel (%p563) target = $region80
        $region79: #{tpu_custom_call.1} parent=71 // pred_region
          %566 = dma.done [#allocation7], 256
        $region80: #{tpu_custom_call.1} parent=71 // pred_fallthru
          _
        %s567 = sand.u32 %s27, 1
        %s568 = scalar_lea.sflag [#allocation4], %s567
        %s569 = sand.u32 %s198, 1
        %s570 = scalar_lea.vmem [#allocation8], %s569
        // Predicated region
        $region81: #{tpu_custom_call.1} parent=71 // pred_check
          %p571 = pneg %p211
        $region82: #{tpu_custom_call.1} parent=71 // pred_check_branch
          %573 = sbr.rel (%p571) target = $region84
        $region83: #{tpu_custom_call.1} parent=71 // pred_region
          %574 = dma.done %s568, 16
        $region84: #{tpu_custom_call.1} parent=71 // pred_fallthru
          _
        %s575 = sand.u32 %s27, 1
        %s576 = scalar_lea.sflag [#allocation4], %s575
        %s577 = sand.u32 %s224, 1
        %s578 = smul.addr %s577, 16
        %s579 = scalar_lea.vmem [#allocation9], %s578
        // Predicated region
        $region85: #{tpu_custom_call.1} parent=71 // pred_check
          %p580 = pneg %p237
        $region86: #{tpu_custom_call.1} parent=71 // pred_check_branch
          %582 = sbr.rel (%p580) target = $region88
        $region87: #{tpu_custom_call.1} parent=71 // pred_region
          %583 = dma.done %s576, 256
        $region88: #{tpu_custom_call.1} parent=71 // pred_fallthru
          _
        %s584 = sand.u32 %s27, 1
        %s585 = scalar_lea.sflag [#allocation4], %s584
        %s586 = sand.u32 %s250, 1
        %s587 = scalar_lea.vmem [#allocation10], %s586
        // Predicated region
        $region89: #{tpu_custom_call.1} parent=71 // pred_check
          %p588 = pneg %p263
        $region90: #{tpu_custom_call.1} parent=71 // pred_check_branch
          %590 = sbr.rel (%p588) target = $region92
        $region91: #{tpu_custom_call.1} parent=71 // pred_region
          %591 = dma.done %s585, 16
        $region92: #{tpu_custom_call.1} parent=71 // pred_fallthru
          _
        %p592 = pneg %p60
        %p593 = pneg %p57
        %p594 = pneg %p81
        %p595 = pneg %p78
        %p596 = scmp.lt.s32.totalorder %s32, 1
        %s597 = scalar_select %p596, %s32, 1
        %s598 = smul.addr %s597, 4
        %s599 = smul.addr %s598, 4
        %s600 = scalar_lea.vmem %s2, %s599
        %p601 = pneg %p107
        %p602 = pneg %p104
        %p603 = scmp.lt.s32.totalorder %s32, 1
        %s604 = scalar_select %p603, %s32, 1
        %s605 = smul.addr %s604, 4
        %s606 = smul.addr %s605, 4
        %s607 = scalar_lea.vmem %s3, %s606
        %p608 = pneg %p133
        %p609 = pneg %p130
        %p610 = scmp.lt.s32.totalorder %s32, 1
        %s611 = scalar_select %p610, %s32, 1
        %s612 = smul.addr %s611, 4
        %s613 = smul.addr %s612, 4
        %s614 = scalar_lea.vmem %s4, %s613
        %p615 = pneg %p159
        %p616 = pneg %p156
        %p617 = scmp.lt.s32.totalorder %s32, 1
        %s618 = scalar_select %p617, %s32, 1
        %s619 = scalar_lea.vmem %s5, %s618
        %p620 = pneg %p185
        %p621 = pneg %p182
        %s622 = sand.u32 %s27, 1
        %s623 = scalar_lea.sflag [#allocation4], %s622
        %s624 = sand.u32 %s198, 1
        %s625 = scalar_lea.vmem [#allocation8], %s624
        %p626 = pneg %p211
        %p627 = pneg %p208
        %s628 = sand.u32 %s27, 1
        %s629 = scalar_lea.sflag [#allocation4], %s628
        %s630 = sand.u32 %s224, 1
        %s631 = smul.addr %s630, 16
        %s632 = scalar_lea.vmem [#allocation9], %s631
        %p633 = pneg %p237
        %p634 = pneg %p234
        %s635 = sand.u32 %s27, 1
        %s636 = scalar_lea.sflag [#allocation4], %s635
        %s637 = sand.u32 %s250, 1
        %s638 = scalar_lea.vmem [#allocation10], %s637
        %p639 = pneg %p263
        %p640 = pneg %p260
        %p641 = scmp.lt.s32.totalorder %s32, 1
        %s642 = scalar_select %p641, %s32, 1
        %s643 = smul.addr %s642, 8
        %s644 = smul.addr %s643, 4
        %s645 = scalar_lea.vmem %s9, %s644
        %p646 = pneg %p289
        %p647 = pneg %p286
        %p648 = scmp.lt.s32.totalorder %s32, 1
        %s649 = scalar_select %p648, %s32, 1
        %s650 = scalar_lea.vmem %s10, %s649
        %p651 = pneg %p315
        %p652 = pneg %p312
        %p653 = scmp.lt.s32.totalorder %s32, 1
        %s654 = scalar_select %p653, %s32, 1
        %s655 = scalar_lea.vmem %s11, %s654
        %p656 = pneg %p341
        %p657 = pneg %p338
        %p658 = scmp.lt.s32.totalorder %s32, 1
        %s659 = scalar_select %p658, %s32, 1
        %s660 = scalar_lea.vmem %s12, %s659
        %p661 = pneg %p367
        %p662 = pneg %p364
        %p663 = pneg %p393
        %p664 = pneg %p390
        %s665 = smul.u32 2, %s31
        %p666 = scmp.lt.s32.totalorder %s32, 1
        %s667 = scalar_select %p666, %s32, 1
        %s668 = smul.addr %s667, 4
        %s669 = smul.addr %s668, 4
        %s670 = scalar_lea.vmem %s2, %s669
        %p671 = scmp.lt.s32.totalorder %s32, 1
        %s672 = scalar_select %p671, %s32, 1
        %s673 = smul.addr %s672, 4
        %s674 = smul.addr %s673, 4
        %s675 = scalar_lea.vmem %s3, %s674
        %p676 = scmp.lt.s32.totalorder %s32, 1
        %s677 = scalar_select %p676, %s32, 1
        %s678 = smul.addr %s677, 4
        %s679 = smul.addr %s678, 4
        %s680 = scalar_lea.vmem %s4, %s679
        %p681 = scmp.lt.s32.totalorder %s32, 1
        %s682 = scalar_select %p681, %s32, 1
        %s683 = scalar_lea.vmem %s5, %s682
        %p684 = scmp.lt.s32.totalorder %s32, 1
        %s685 = scalar_select %p684, %s32, 1
        %s686 = smul.addr %s685, 8
        %s687 = smul.addr %s686, 4
        %s688 = scalar_lea.vmem %s9, %s687
        %p689 = scmp.lt.s32.totalorder %s32, 1
        %s690 = scalar_select %p689, %s32, 1
        %s691 = scalar_lea.vmem %s10, %s690
        %p692 = scmp.lt.s32.totalorder %s32, 1
        %s693 = scalar_select %p692, %s32, 1
        %s694 = scalar_lea.vmem %s11, %s693
        %p695 = scmp.lt.s32.totalorder %s32, 1
        %s696 = scalar_select %p695, %s32, 1
        %s697 = scalar_lea.vmem %s12, %s696
        %s698 = smul.u32 2, %s31
        %p702 = scmp.eq.s32.totalorder %s32, 0
        // Predicated region
        $region93: #{tpu_custom_call.1} parent=71 // pred_check
          %p703 = pneg %p702
        $region94: #{tpu_custom_call.1} parent=71 // pred_check_branch
          %705 = sbr.rel (%p703) target = $region96
        $region95: #{tpu_custom_call.1} parent=71 // pred_region
          %v706 = vld [vmem:[#allocation3] sm:$0xff]
          %v707 = vld [vmem:[#allocation3 + $0x8] sm:$0xff]
          %vm708 = vcmask 261120
          %709 = vst.msk [vmem:[#allocation2] sm:$0xff] %vm708, %v706
          %710 = vst.msk [vmem:[#allocation2 + $0x8] sm:$0xff] %vm708, %v707
        $region96: #{tpu_custom_call.1} parent=71 // pred_fallthru
          _
        %v711 = vld [vmem:[#allocation2] sm:$0xff]
        %v712 = vld [vmem:[#allocation2 + $0x8] sm:$0xff]
        %v713 = vpack.c.bf16 %v712, %v711
        %v714 = vld [vmem:[%s670] sm:$0xf]
        %v715 = vld [vmem:[%s670 + $0x4] sm:$0xf]
        %v716 = vld [vmem:[%s670 + $0x8] sm:$0xf]
        %v717 = vld [vmem:[%s670 + $0xc] sm:$0xf]
        %v722 = vunpack.c.l.b16 %v714
        %v723 = vunpack.c.l.b16 %v715
        %v724 = vunpack.c.l.b16 %v716
        %v725 = vunpack.c.l.b16 %v717
        %v726 = vpack.c.b16 %v723, %v722
        %v727 = vpack.c.b16 %v725, %v724
        %vm730 = vcmask 261120
        %v732 = vsel %vm730, %v713, 0
        %734 = vmatprep.subr.bf16.mxu0 0
        %735 = vmatpush1.bf16.msra.mxu0 %v726
        %736 = vmatprep.subr.bf16.mxu0 0
        %737 = vmatpush1.bf16.msra.mxu0 %v727
        %738 = vmatprep.subr.bf16.mxu0 0
        %739 = vmatpush1.bf16.msra.mxu0 0
        %740 = vmatprep.subr.bf16.mxu0 0
        %741 = vmatpush1.bf16.msra.mxu0 0
        %742 = vmatprep.subr.bf16.mxu0 0
        %743 = vmatpush1.bf16.msra.mxu0 0
        %744 = vmatprep.subr.bf16.mxu0 0
        %745 = vmatpush1.bf16.msra.mxu0 0
        %746 = vmatprep.subr.bf16.mxu0 0
        %747 = vmatpush1.bf16.msra.mxu0 0
        %748 = vmatprep.subr.bf16.mxu0 0
        %749 = vmatpush1.bf16.msra.mxu0 0
        %750 = vmatprep.subr.bf16.mxu0 0
        %751 = vmatpush1.bf16.msra.mxu0 0
        %752 = vmatprep.subr.bf16.mxu0 0
        %753 = vmatpush1.bf16.msra.mxu0 0
        %754 = vmatprep.subr.bf16.mxu0 0
        %755 = vmatpush1.bf16.msra.mxu0 0
        %756 = vmatprep.subr.bf16.mxu0 0
        %757 = vmatpush1.bf16.msra.mxu0 0
        %758 = vmatprep.subr.bf16.mxu0 0
        %759 = vmatpush1.bf16.msra.mxu0 0
        %760 = vmatprep.subr.bf16.mxu0 0
        %761 = vmatpush1.bf16.msra.mxu0 0
        %762 = vmatprep.subr.bf16.mxu0 0
        %763 = vmatpush1.bf16.msra.mxu0 0
        %764 = vmatprep.subr.bf16.mxu0 0
        %765 = vmatpush1.bf16.msra.mxu0 0
        %766 = vmatprep.mubr.bf16.mxu0 0
        %767 = vmatmul.mubr.bf16.gmra.mrb[0].mxu0 %v732
        %v768 = vpop.f32.mrb[0].mxu0
        %v769 = vadd.f32 0.0, %v768
        %v770 = vpop.f32.mrb[0].mxu0
        %v771 = vpop.f32.mrb[0].mxu0
        %v772 = vadd.f32 0.0, %v771
        %v773 = vpop.f32.mrb[0].mxu0
        %774 = vdwg.mxu0
        %v775 = vmul.f32 %v769, 0.35355338
        %v776 = vmul.f32 %v772, 0.35355338
        %v777 = vld [vmem:[%s675] sm:$0xf]
        %v778 = vld [vmem:[%s675 + $0x4] sm:$0xf]
        %v779 = vld [vmem:[%s675 + $0x8] sm:$0xf]
        %v780 = vld [vmem:[%s675 + $0xc] sm:$0xf]
        %v785 = vunpack.c.l.b16 %v777
        %v786 = vunpack.c.l.b16 %v778
        %v787 = vunpack.c.l.b16 %v779
        %v788 = vunpack.c.l.b16 %v780
        %v789 = vpack.c.b16 %v786, %v785
        %v790 = vpack.c.b16 %v788, %v787
        %793 = vmatprep.subr.bf16.mxu0 0
        %794 = vmatpush1.bf16.msra.mxu0 %v789
        %795 = vmatprep.subr.bf16.mxu0 0
        %796 = vmatpush1.bf16.msra.mxu0 %v790
        %797 = vmatprep.subr.bf16.mxu0 0
        %798 = vmatpush1.bf16.msra.mxu0 0
        %799 = vmatprep.subr.bf16.mxu0 0
        %800 = vmatpush1.bf16.msra.mxu0 0
        %801 = vmatprep.subr.bf16.mxu0 0
        %802 = vmatpush1.bf16.msra.mxu0 0
        %803 = vmatprep.subr.bf16.mxu0 0
        %804 = vmatpush1.bf16.msra.mxu0 0
        %805 = vmatprep.subr.bf16.mxu0 0
        %806 = vmatpush1.bf16.msra.mxu0 0
        %807 = vmatprep.subr.bf16.mxu0 0
        %808 = vmatpush1.bf16.msra.mxu0 0
        %809 = vmatprep.subr.bf16.mxu0 0
        %810 = vmatpush1.bf16.msra.mxu0 0
        %811 = vmatprep.subr.bf16.mxu0 0
        %812 = vmatpush1.bf16.msra.mxu0 0
        %813 = vmatprep.subr.bf16.mxu0 0
        %814 = vmatpush1.bf16.msra.mxu0 0
        %815 = vmatprep.subr.bf16.mxu0 0
        %816 = vmatpush1.bf16.msra.mxu0 0
        %817 = vmatprep.subr.bf16.mxu0 0
        %818 = vmatpush1.bf16.msra.mxu0 0
        %819 = vmatprep.subr.bf16.mxu0 0
        %820 = vmatpush1.bf16.msra.mxu0 0
        %821 = vmatprep.subr.bf16.mxu0 0
        %822 = vmatpush1.bf16.msra.mxu0 0
        %823 = vmatprep.subr.bf16.mxu0 0
        %824 = vmatpush1.bf16.msra.mxu0 0
        %825 = vmatprep.mubr.bf16.mxu0 0
        %826 = vmatmul.mubr.bf16.gmra.mrb[0].mxu0 %v732
        %v827 = vpop.f32.mrb[0].mxu0
        %v828 = vadd.f32 0.0, %v827
        %v829 = vpop.f32.mrb[0].mxu0
        %v830 = vpop.f32.mrb[0].mxu0
        %v831 = vadd.f32 0.0, %v830
        %v832 = vpop.f32.mrb[0].mxu0
        %833 = vdwg.mxu0
        %v834 = vld [vmem:[%s680] sm:$0xf]
        %v835 = vld [vmem:[%s680 + $0x4] sm:$0xf]
        %v836 = vld [vmem:[%s680 + $0x8] sm:$0xf]
        %v837 = vld [vmem:[%s680 + $0xc] sm:$0xf]
        %v842 = vunpack.c.l.b16 %v834
        %v843 = vunpack.c.l.b16 %v835
        %v844 = vunpack.c.l.b16 %v836
        %v845 = vunpack.c.l.b16 %v837
        %v846 = vpack.c.b16 %v843, %v842
        %v847 = vpack.c.b16 %v845, %v844
        %850 = vmatprep.subr.bf16.mxu0 0
        %851 = vmatpush1.bf16.msra.mxu0 %v846
        %852 = vmatprep.subr.bf16.mxu0 0
        %853 = vmatpush1.bf16.msra.mxu0 %v847
        %854 = vmatprep.subr.bf16.mxu0 0
        %855 = vmatpush1.bf16.msra.mxu0 0
        %856 = vmatprep.subr.bf16.mxu0 0
        %857 = vmatpush1.bf16.msra.mxu0 0
        %858 = vmatprep.subr.bf16.mxu0 0
        %859 = vmatpush1.bf16.msra.mxu0 0
        %860 = vmatprep.subr.bf16.mxu0 0
        %861 = vmatpush1.bf16.msra.mxu0 0
        %862 = vmatprep.subr.bf16.mxu0 0
        %863 = vmatpush1.bf16.msra.mxu0 0
        %864 = vmatprep.subr.bf16.mxu0 0
        %865 = vmatpush1.bf16.msra.mxu0 0
        %866 = vmatprep.subr.bf16.mxu0 0
        %867 = vmatpush1.bf16.msra.mxu0 0
        %868 = vmatprep.subr.bf16.mxu0 0
        %869 = vmatpush1.bf16.msra.mxu0 0
        %870 = vmatprep.subr.bf16.mxu0 0
        %871 = vmatpush1.bf16.msra.mxu0 0
        %872 = vmatprep.subr.bf16.mxu0 0
        %873 = vmatpush1.bf16.msra.mxu0 0
        %874 = vmatprep.subr.bf16.mxu0 0
        %875 = vmatpush1.bf16.msra.mxu0 0
        %876 = vmatprep.subr.bf16.mxu0 0
        %877 = vmatpush1.bf16.msra.mxu0 0
        %878 = vmatprep.subr.bf16.mxu0 0
        %879 = vmatpush1.bf16.msra.mxu0 0
        %880 = vmatprep.subr.bf16.mxu0 0
        %881 = vmatpush1.bf16.msra.mxu0 0
        %882 = vmatprep.mubr.bf16.mxu0 0
        %883 = vmatmul.mubr.bf16.gmra.mrb[0].mxu0 %v732
        %v884 = vpop.f32.mrb[0].mxu0
        %v885 = vadd.f32 0.0, %v884
        %v886 = vpop.f32.mrb[0].mxu0
        %v887 = vpop.f32.mrb[0].mxu0
        %v888 = vadd.f32 0.0, %v887
        %v889 = vpop.f32.mrb[0].mxu0
        %890 = vdwg.mxu0
        %v891 = vpack.c.bf16 %v776, %v775
        %v892 = vpack.c.bf16 %v831, %v828
        %v893 = vpack.c.bf16 %v888, %v885
        %v894 = vld [vmem:[#allocation6] sm:$0xff]
        %v895 = vld [vmem:[#allocation6 + $0x8] sm:$0xff]
        %v896 = vlaneseq
        %v897 = vand.u32 %v896, 127
        %vm898 = vcmp.ge.s32.totalorder %v897, 0
        %vm899 = vcmp.lt.s32.totalorder %v897, 8
        %vm900 = vmand %vm898, %vm899
        %vm901 = vmpackc.low %vm900, %vm900
        %v902 = vsel %vm901, 65537, 0
        %v903 = vlaneseq
        %v904 = vshrl.u32 %v903, 7
        %v905 = vsub.s32 0, %v904
        %v906 = vrot.slane %v902, %v905
        %vm907 = vcmp.ne.s16.totalorder %v906, 0
        %v908 = vsel %vm907, %v892, 0
        %v909 = vsel %vm907, %v893, 0
        %v911 = vsel %vm730, %v891, 0
        %v914 = vsel %vm730, %v908, 0
        %916 = vmatprep.subr.bf16.mxu0 0
        %917 = vmatpush1.bf16.xpose.msra.mxu0 %v914
        %918 = vmatprep.subr.bf16.mxu0 0
        %919 = vmatpush1.bf16.xpose.msra.mxu0 0
        %920 = vmatprep.subr.bf16.mxu0 0
        %921 = vmatpush1.bf16.xpose.msra.mxu0 0
        %922 = vmatprep.subr.bf16.mxu0 0
        %923 = vmatpush1.bf16.xpose.msra.mxu0 0
        %924 = vmatprep.subr.bf16.mxu0 0
        %925 = vmatpush1.bf16.xpose.msra.mxu0 0
        %926 = vmatprep.subr.bf16.mxu0 0
        %927 = vmatpush1.bf16.xpose.msra.mxu0 0
        %928 = vmatprep.subr.bf16.mxu0 0
        %929 = vmatpush1.bf16.xpose.msra.mxu0 0
        %930 = vmatprep.subr.bf16.mxu0 0
        %931 = vmatpush1.bf16.xpose.msra.mxu0 0
        %932 = vmatprep.subr.bf16.mxu0 0
        %933 = vmatpush1.bf16.xpose.msra.mxu0 0
        %934 = vmatprep.subr.bf16.mxu0 0
        %935 = vmatpush1.bf16.xpose.msra.mxu0 0
        %936 = vmatprep.subr.bf16.mxu0 0
        %937 = vmatpush1.bf16.xpose.msra.mxu0 0
        %938 = vmatprep.subr.bf16.mxu0 0
        %939 = vmatpush1.bf16.xpose.msra.mxu0 0
        %940 = vmatprep.subr.bf16.mxu0 0
        %941 = vmatpush1.bf16.xpose.msra.mxu0 0
        %942 = vmatprep.subr.bf16.mxu0 0
        %943 = vmatpush1.bf16.xpose.msra.mxu0 0
        %944 = vmatprep.subr.bf16.mxu0 0
        %945 = vmatpush1.bf16.xpose.msra.mxu0 0
        %946 = vmatprep.subr.bf16.mxu0 0
        %947 = vmatpush1.bf16.xpose.msra.mxu0 0
        %948 = vmatprep.mubr.bf16.mxu0 0
        %949 = vmatmul.mubr.bf16.gmra.mrb[0].mxu0 %v911
        %v950 = vpop.f32.mrb[0].mxu0
        %v951 = vadd.f32 %v894, %v950
        %v952 = vpop.f32.mrb[0].mxu0
        %v953 = vpop.f32.mrb[0].mxu0
        %v954 = vadd.f32 %v895, %v953
        %v955 = vpop.f32.mrb[0].mxu0
        %956 = vdwg.mxu0
        %vm957 = vcmask 130048
        %v958 = vsel %vm957, %v951, -inf
        %959 = vmax.xlane.f32.xlu0 %v958
        %v960 = vpop.xlane.xlu0 %959
        %v961 = vsel %vm957, %v954, -inf
        %962 = vmax.xlane.f32.xlu0 %v961
        %v963 = vpop.xlane.xlu0 %962
        %v964 = vsub.f32 %v951, %v960
        %v965 = vsub.f32 %v954, %v963
        %v966 = vmul.f32 %v964, 1.442695
        %v967 = vpow.pop %v966
        %v968 = vmul.f32 %v965, 1.442695
        %v969 = vpow.pop %v968
        %v970 = vsel %vm957, %v967, 0.0
        %971 = vadd.xlane.f32.xlu0 %v970
        %v972 = vpop.xlane.xlu0 %971
        %v973 = vsel %vm957, %v969, 0.0
        %974 = vadd.xlane.f32.xlu0 %v973
        %v975 = vpop.xlane.xlu0 %974
        %v976 = vrcp.pop %v972
        %v977 = vrcp.pop %v975
        %v978 = vpack.c.bf16 %v969, %v967
        %v980 = vsel %vm957, %v978, 0
        %982 = vmatprep.subr.bf16.mxu0 0
        %983 = vmatpush1.bf16.msra.mxu0 %v909
        %984 = vmatprep.subr.bf16.mxu0 0
        %985 = vmatpush1.bf16.msra.mxu0 0
        %986 = vmatprep.subr.bf16.mxu0 0
        %987 = vmatpush1.bf16.msra.mxu0 0
        %988 = vmatprep.subr.bf16.mxu0 0
        %989 = vmatpush1.bf16.msra.mxu0 0
        %990 = vmatprep.subr.bf16.mxu0 0
        %991 = vmatpush1.bf16.msra.mxu0 0
        %992 = vmatprep.subr.bf16.mxu0 0
        %993 = vmatpush1.bf16.msra.mxu0 0
        %994 = vmatprep.subr.bf16.mxu0 0
        %995 = vmatpush1.bf16.msra.mxu0 0
        %996 = vmatprep.subr.bf16.mxu0 0
        %997 = vmatpush1.bf16.msra.mxu0 0
        %998 = vmatprep.subr.bf16.mxu0 0
        %999 = vmatpush1.bf16.msra.mxu0 0
        %1000 = vmatprep.subr.bf16.mxu0 0
        %1001 = vmatpush1.bf16.msra.mxu0 0
        %1002 = vmatprep.subr.bf16.mxu0 0
        %1003 = vmatpush1.bf16.msra.mxu0 0
        %1004 = vmatprep.subr.bf16.mxu0 0
        %1005 = vmatpush1.bf16.msra.mxu0 0
        %1006 = vmatprep.subr.bf16.mxu0 0
        %1007 = vmatpush1.bf16.msra.mxu0 0
        %1008 = vmatprep.subr.bf16.mxu0 0
        %1009 = vmatpush1.bf16.msra.mxu0 0
        %1010 = vmatprep.subr.bf16.mxu0 0
        %1011 = vmatpush1.bf16.msra.mxu0 0
        %1012 = vmatprep.subr.bf16.mxu0 0
        %1013 = vmatpush1.bf16.msra.mxu0 0
        %1014 = vmatprep.mubr.bf16.mxu0 0
        %1015 = vmatmul.mubr.bf16.gmra.mrb[0].mxu0 %v980
        %v1016 = vpop.f32.mrb[0].mxu0
        %v1017 = vadd.f32 0.0, %v1016
        %v1018 = vpop.f32.mrb[0].mxu0
        %v1019 = vpop.f32.mrb[0].mxu0
        %v1020 = vadd.f32 0.0, %v1019
        %v1021 = vpop.f32.mrb[0].mxu0
        %1022 = vdwg.mxu0
        %v1023 = vmul.f32 %v1017, %v976
        %v1024 = vmul.f32 %v1020, %v977
        %v1025 = vadd.f32 %v1023, 0.0
        %v1026 = vadd.f32 %v1024, 0.0
        %vm1027 = vcmp.ge.s32.totalorder %v897, 8
        %vm1028 = vcmp.lt.s32.totalorder %v897, 16
        %vm1029 = vmand %vm1027, %vm1028
        %vm1030 = vmpackc.low %vm1029, %vm1029
        %v1031 = vsel %vm1030, 65537, 0
        %v1032 = vlaneseq
        %v1033 = vshrl.u32 %v1032, 7
        %v1034 = vsub.s32 0, %v1033
        %v1035 = vrot.slane %v1031, %v1034
        %vm1036 = vcmp.ne.s16.totalorder %v1035, 0
        %v1037 = vsel %vm1036, %v892, 0
        %v1038 = vsel %vm1036, %v893, 0
        %v1040 = vsel %vm730, %v1037, 0
        %1042 = vmatprep.subr.bf16.mxu0 0
        %1043 = vmatpush1.bf16.xpose.msra.mxu0 %v1040
        %1044 = vmatprep.subr.bf16.mxu0 0
        %1045 = vmatpush1.bf16.xpose.msra.mxu0 0
        %1046 = vmatprep.subr.bf16.mxu0 0
        %1047 = vmatpush1.bf16.xpose.msra.mxu0 0
        %1048 = vmatprep.subr.bf16.mxu0 0
        %1049 = vmatpush1.bf16.xpose.msra.mxu0 0
        %1050 = vmatprep.subr.bf16.mxu0 0
        %1051 = vmatpush1.bf16.xpose.msra.mxu0 0
        %1052 = vmatprep.subr.bf16.mxu0 0
        %1053 = vmatpush1.bf16.xpose.msra.mxu0 0
        %1054 = vmatprep.subr.bf16.mxu0 0
        %1055 = vmatpush1.bf16.xpose.msra.mxu0 0
        %1056 = vmatprep.subr.bf16.mxu0 0
        %1057 = vmatpush1.bf16.xpose.msra.mxu0 0
        %1058 = vmatprep.subr.bf16.mxu0 0
        %1059 = vmatpush1.bf16.xpose.msra.mxu0 0
        %1060 = vmatprep.subr.bf16.mxu0 0
        %1061 = vmatpush1.bf16.xpose.msra.mxu0 0
        %1062 = vmatprep.subr.bf16.mxu0 0
        %1063 = vmatpush1.bf16.xpose.msra.mxu0 0
        %1064 = vmatprep.subr.bf16.mxu0 0
        %1065 = vmatpush1.bf16.xpose.msra.mxu0 0
        %1066 = vmatprep.subr.bf16.mxu0 0
        %1067 = vmatpush1.bf16.xpose.msra.mxu0 0
        %1068 = vmatprep.subr.bf16.mxu0 0
        %1069 = vmatpush1.bf16.xpose.msra.mxu0 0
        %1070 = vmatprep.subr.bf16.mxu0 0
        %1071 = vmatpush1.bf16.xpose.msra.mxu0 0
        %1072 = vmatprep.subr.bf16.mxu0 0
        %1073 = vmatpush1.bf16.xpose.msra.mxu0 0
        %1074 = vmatprep.mubr.bf16.mxu0 0
        %1075 = vmatmul.mubr.bf16.gmra.mrb[0].mxu0 %v911
        %v1076 = vpop.f32.mrb[0].mxu0
        %v1077 = vadd.f32 %v894, %v1076
        %v1078 = vpop.f32.mrb[0].mxu0
        %v1079 = vpop.f32.mrb[0].mxu0
        %v1080 = vadd.f32 %v895, %v1079
        %v1081 = vpop.f32.mrb[0].mxu0
        %1082 = vdwg.mxu0
        %v1083 = vsel %vm957, %v1077, -inf
        %1084 = vmax.xlane.f32.xlu0 %v1083
        %v1085 = vpop.xlane.xlu0 %1084
        %v1086 = vsel %vm957, %v1080, -inf
        %1087 = vmax.xlane.f32.xlu0 %v1086
        %v1088 = vpop.xlane.xlu0 %1087
        %v1089 = vsub.f32 %v1077, %v1085
        %v1090 = vsub.f32 %v1080, %v1088
        %v1091 = vmul.f32 %v1089, 1.442695
        %v1092 = vpow.pop %v1091
        %v1093 = vmul.f32 %v1090, 1.442695
        %v1094 = vpow.pop %v1093
        %v1095 = vsel %vm957, %v1092, 0.0
        %1096 = vadd.xlane.f32.xlu0 %v1095
        %v1097 = vpop.xlane.xlu0 %1096
        %v1098 = vsel %vm957, %v1094, 0.0
        %1099 = vadd.xlane.f32.xlu0 %v1098
        %v1100 = vpop.xlane.xlu0 %1099
        %v1101 = vrcp.pop %v1097
        %v1102 = vrcp.pop %v1100
        %v1103 = vpack.c.bf16 %v1094, %v1092
        %v1105 = vsel %vm957, %v1103, 0
        %1107 = vmatprep.subr.bf16.mxu0 0
        %1108 = vmatpush1.bf16.msra.mxu0 %v1038
        %1109 = vmatprep.subr.bf16.mxu0 0
        %1110 = vmatpush1.bf16.msra.mxu0 0
        %1111 = vmatprep.subr.bf16.mxu0 0
        %1112 = vmatpush1.bf16.msra.mxu0 0
        %1113 = vmatprep.subr.bf16.mxu0 0
        %1114 = vmatpush1.bf16.msra.mxu0 0
        %1115 = vmatprep.subr.bf16.mxu0 0
        %1116 = vmatpush1.bf16.msra.mxu0 0
        %1117 = vmatprep.subr.bf16.mxu0 0
        %1118 = vmatpush1.bf16.msra.mxu0 0
        %1119 = vmatprep.subr.bf16.mxu0 0
        %1120 = vmatpush1.bf16.msra.mxu0 0
        %1121 = vmatprep.subr.bf16.mxu0 0
        %1122 = vmatpush1.bf16.msra.mxu0 0
        %1123 = vmatprep.subr.bf16.mxu0 0
        %1124 = vmatpush1.bf16.msra.mxu0 0
        %1125 = vmatprep.subr.bf16.mxu0 0
        %1126 = vmatpush1.bf16.msra.mxu0 0
        %1127 = vmatprep.subr.bf16.mxu0 0
        %1128 = vmatpush1.bf16.msra.mxu0 0
        %1129 = vmatprep.subr.bf16.mxu0 0
        %1130 = vmatpush1.bf16.msra.mxu0 0
        %1131 = vmatprep.subr.bf16.mxu0 0
        %1132 = vmatpush1.bf16.msra.mxu0 0
        %1133 = vmatprep.subr.bf16.mxu0 0
        %1134 = vmatpush1.bf16.msra.mxu0 0
        %1135 = vmatprep.subr.bf16.mxu0 0
        %1136 = vmatpush1.bf16.msra.mxu0 0
        %1137 = vmatprep.subr.bf16.mxu0 0
        %1138 = vmatpush1.bf16.msra.mxu0 0
        %1139 = vmatprep.mubr.bf16.mxu0 0
        %1140 = vmatmul.mubr.bf16.gmra.mrb[0].mxu0 %v1105
        %v1141 = vpop.f32.mrb[0].mxu0
        %v1142 = vadd.f32 0.0, %v1141
        %v1143 = vpop.f32.mrb[0].mxu0
        %v1144 = vpop.f32.mrb[0].mxu0
        %v1145 = vadd.f32 0.0, %v1144
        %v1146 = vpop.f32.mrb[0].mxu0
        %1147 = vdwg.mxu0
        %v1148 = vmul.f32 %v1142, %v1101
        %v1149 = vmul.f32 %v1145, %v1102
        %v1150 = vadd.f32 %v1025, %v1148
        %v1151 = vadd.f32 %v1026, %v1149
        %vm1152 = vcmp.ge.s32.totalorder %v897, 16
        %vm1153 = vcmp.lt.s32.totalorder %v897, 24
        %vm1154 = vmand %vm1152, %vm1153
        %vm1155 = vmpackc.low %vm1154, %vm1154
        %v1156 = vsel %vm1155, 65537, 0
        %v1157 = vlaneseq
        %v1158 = vshrl.u32 %v1157, 7
        %v1159 = vsub.s32 0, %v1158
        %v1160 = vrot.slane %v1156, %v1159
        %vm1161 = vcmp.ne.s16.totalorder %v1160, 0
        %v1162 = vsel %vm1161, %v892, 0
        %v1163 = vsel %vm1161, %v893, 0
        %v1165 = vsel %vm730, %v1162, 0
        %1167 = vmatprep.subr.bf16.mxu0 0
        %1168 = vmatpush1.bf16.xpose.msra.mxu0 %v1165
        %1169 = vmatprep.subr.bf16.mxu0 0
        %1170 = vmatpush1.bf16.xpose.msra.mxu0 0
        %1171 = vmatprep.subr.bf16.mxu0 0
        %1172 = vmatpush1.bf16.xpose.msra.mxu0 0
        %1173 = vmatprep.subr.bf16.mxu0 0
        %1174 = vmatpush1.bf16.xpose.msra.mxu0 0
        %1175 = vmatprep.subr.bf16.mxu0 0
        %1176 = vmatpush1.bf16.xpose.msra.mxu0 0
        %1177 = vmatprep.subr.bf16.mxu0 0
        %1178 = vmatpush1.bf16.xpose.msra.mxu0 0
        %1179 = vmatprep.subr.bf16.mxu0 0
        %1180 = vmatpush1.bf16.xpose.msra.mxu0 0
        %1181 = vmatprep.subr.bf16.mxu0 0
        %1182 = vmatpush1.bf16.xpose.msra.mxu0 0
        %1183 = vmatprep.subr.bf16.mxu0 0
        %1184 = vmatpush1.bf16.xpose.msra.mxu0 0
        %1185 = vmatprep.subr.bf16.mxu0 0
        %1186 = vmatpush1.bf16.xpose.msra.mxu0 0
        %1187 = vmatprep.subr.bf16.mxu0 0
        %1188 = vmatpush1.bf16.xpose.msra.mxu0 0
        %1189 = vmatprep.subr.bf16.mxu0 0
        %1190 = vmatpush1.bf16.xpose.msra.mxu0 0
        %1191 = vmatprep.subr.bf16.mxu0 0
        %1192 = vmatpush1.bf16.xpose.msra.mxu0 0
        %1193 = vmatprep.subr.bf16.mxu0 0
        %1194 = vmatpush1.bf16.xpose.msra.mxu0 0
        %1195 = vmatprep.subr.bf16.mxu0 0
        %1196 = vmatpush1.bf16.xpose.msra.mxu0 0
        %1197 = vmatprep.subr.bf16.mxu0 0
        %1198 = vmatpush1.bf16.xpose.msra.mxu0 0
        %1199 = vmatprep.mubr.bf16.mxu0 0
        %1200 = vmatmul.mubr.bf16.gmra.mrb[0].mxu0 %v911
        %v1201 = vpop.f32.mrb[0].mxu0
        %v1202 = vadd.f32 %v894, %v1201
        %v1203 = vpop.f32.mrb[0].mxu0
        %v1204 = vpop.f32.mrb[0].mxu0
        %v1205 = vadd.f32 %v895, %v1204
        %v1206 = vpop.f32.mrb[0].mxu0
        %1207 = vdwg.mxu0
        %v1208 = vsel %vm957, %v1202, -inf
        %1209 = vmax.xlane.f32.xlu0 %v1208
        %v1210 = vpop.xlane.xlu0 %1209
        %v1211 = vsel %vm957, %v1205, -inf
        %1212 = vmax.xlane.f32.xlu0 %v1211
        %v1213 = vpop.xlane.xlu0 %1212
        %v1214 = vsub.f32 %v1202, %v1210
        %v1215 = vsub.f32 %v1205, %v1213
        %v1216 = vmul.f32 %v1214, 1.442695
        %v1217 = vpow.pop %v1216
        %v1218 = vmul.f32 %v1215, 1.442695
        %v1219 = vpow.pop %v1218
        %v1220 = vsel %vm957, %v1217, 0.0
        %1221 = vadd.xlane.f32.xlu0 %v1220
        %v1222 = vpop.xlane.xlu0 %1221
        %v1223 = vsel %vm957, %v1219, 0.0
        %1224 = vadd.xlane.f32.xlu0 %v1223
        %v1225 = vpop.xlane.xlu0 %1224
        %v1226 = vrcp.pop %v1222
        %v1227 = vrcp.pop %v1225
        %v1228 = vpack.c.bf16 %v1219, %v1217
        %v1230 = vsel %vm957, %v1228, 0
        %1232 = vmatprep.subr.bf16.mxu0 0
        %1233 = vmatpush1.bf16.msra.mxu0 %v1163
        %1234 = vmatprep.subr.bf16.mxu0 0
        %1235 = vmatpush1.bf16.msra.mxu0 0
        %1236 = vmatprep.subr.bf16.mxu0 0
        %1237 = vmatpush1.bf16.msra.mxu0 0
        %1238 = vmatprep.subr.bf16.mxu0 0
        %1239 = vmatpush1.bf16.msra.mxu0 0
        %1240 = vmatprep.subr.bf16.mxu0 0
        %1241 = vmatpush1.bf16.msra.mxu0 0
        %1242 = vmatprep.subr.bf16.mxu0 0
        %1243 = vmatpush1.bf16.msra.mxu0 0
        %1244 = vmatprep.subr.bf16.mxu0 0
        %1245 = vmatpush1.bf16.msra.mxu0 0
        %1246 = vmatprep.subr.bf16.mxu0 0
        %1247 = vmatpush1.bf16.msra.mxu0 0
        %1248 = vmatprep.subr.bf16.mxu0 0
        %1249 = vmatpush1.bf16.msra.mxu0 0
        %1250 = vmatprep.subr.bf16.mxu0 0
        %1251 = vmatpush1.bf16.msra.mxu0 0
        %1252 = vmatprep.subr.bf16.mxu0 0
        %1253 = vmatpush1.bf16.msra.mxu0 0
        %1254 = vmatprep.subr.bf16.mxu0 0
        %1255 = vmatpush1.bf16.msra.mxu0 0
        %1256 = vmatprep.subr.bf16.mxu0 0
        %1257 = vmatpush1.bf16.msra.mxu0 0
        %1258 = vmatprep.subr.bf16.mxu0 0
        %1259 = vmatpush1.bf16.msra.mxu0 0
        %1260 = vmatprep.subr.bf16.mxu0 0
        %1261 = vmatpush1.bf16.msra.mxu0 0
        %1262 = vmatprep.subr.bf16.mxu0 0
        %1263 = vmatpush1.bf16.msra.mxu0 0
        %1264 = vmatprep.mubr.bf16.mxu0 0
        %1265 = vmatmul.mubr.bf16.gmra.mrb[0].mxu0 %v1230
        %v1266 = vpop.f32.mrb[0].mxu0
        %v1267 = vadd.f32 0.0, %v1266
        %v1268 = vpop.f32.mrb[0].mxu0
        %v1269 = vpop.f32.mrb[0].mxu0
        %v1270 = vadd.f32 0.0, %v1269
        %v1271 = vpop.f32.mrb[0].mxu0
        %1272 = vdwg.mxu0
        %v1273 = vmul.f32 %v1267, %v1226
        %v1274 = vmul.f32 %v1270, %v1227
        %v1275 = vadd.f32 %v1150, %v1273
        %v1276 = vadd.f32 %v1151, %v1274
        %vm1277 = vcmp.ge.s32.totalorder %v897, 24
        %vm1278 = vcmp.lt.s32.totalorder %v897, 32
        %vm1279 = vmand %vm1277, %vm1278
        %vm1280 = vmpackc.low %vm1279, %vm1279
        %v1281 = vsel %vm1280, 65537, 0
        %v1282 = vlaneseq
        %v1283 = vshrl.u32 %v1282, 7
        %v1284 = vsub.s32 0, %v1283
        %v1285 = vrot.slane %v1281, %v1284
        %vm1286 = vcmp.ne.s16.totalorder %v1285, 0
        %v1287 = vsel %vm1286, %v892, 0
        %v1288 = vsel %vm1286, %v893, 0
        %v1290 = vsel %vm730, %v1287, 0
        %1292 = vmatprep.subr.bf16.mxu0 0
        %1293 = vmatpush1.bf16.xpose.msra.mxu0 %v1290
        %1294 = vmatprep.subr.bf16.mxu0 0
        %1295 = vmatpush1.bf16.xpose.msra.mxu0 0
        %1296 = vmatprep.subr.bf16.mxu0 0
        %1297 = vmatpush1.bf16.xpose.msra.mxu0 0
        %1298 = vmatprep.subr.bf16.mxu0 0
        %1299 = vmatpush1.bf16.xpose.msra.mxu0 0
        %1300 = vmatprep.subr.bf16.mxu0 0
        %1301 = vmatpush1.bf16.xpose.msra.mxu0 0
        %1302 = vmatprep.subr.bf16.mxu0 0
        %1303 = vmatpush1.bf16.xpose.msra.mxu0 0
        %1304 = vmatprep.subr.bf16.mxu0 0
        %1305 = vmatpush1.bf16.xpose.msra.mxu0 0
        %1306 = vmatprep.subr.bf16.mxu0 0
        %1307 = vmatpush1.bf16.xpose.msra.mxu0 0
        %1308 = vmatprep.subr.bf16.mxu0 0
        %1309 = vmatpush1.bf16.xpose.msra.mxu0 0
        %1310 = vmatprep.subr.bf16.mxu0 0
        %1311 = vmatpush1.bf16.xpose.msra.mxu0 0
        %1312 = vmatprep.subr.bf16.mxu0 0
        %1313 = vmatpush1.bf16.xpose.msra.mxu0 0
        %1314 = vmatprep.subr.bf16.mxu0 0
        %1315 = vmatpush1.bf16.xpose.msra.mxu0 0
        %1316 = vmatprep.subr.bf16.mxu0 0
        %1317 = vmatpush1.bf16.xpose.msra.mxu0 0
        %1318 = vmatprep.subr.bf16.mxu0 0
        %1319 = vmatpush1.bf16.xpose.msra.mxu0 0
        %1320 = vmatprep.subr.bf16.mxu0 0
        %1321 = vmatpush1.bf16.xpose.msra.mxu0 0
        %1322 = vmatprep.subr.bf16.mxu0 0
        %1323 = vmatpush1.bf16.xpose.msra.mxu0 0
        %1324 = vmatprep.mubr.bf16.mxu0 0
        %1325 = vmatmul.mubr.bf16.gmra.mrb[0].mxu0 %v911
        %v1326 = vpop.f32.mrb[0].mxu0
        %v1327 = vadd.f32 %v894, %v1326
        %v1328 = vpop.f32.mrb[0].mxu0
        %v1329 = vpop.f32.mrb[0].mxu0
        %v1330 = vadd.f32 %v895, %v1329
        %v1331 = vpop.f32.mrb[0].mxu0
        %1332 = vdwg.mxu0
        %v1333 = vsel %vm957, %v1327, -inf
        %1334 = vmax.xlane.f32.xlu0 %v1333
        %v1335 = vpop.xlane.xlu0 %1334
        %v1336 = vsel %vm957, %v1330, -inf
        %1337 = vmax.xlane.f32.xlu0 %v1336
        %v1338 = vpop.xlane.xlu0 %1337
        %v1339 = vsub.f32 %v1327, %v1335
        %v1340 = vsub.f32 %v1330, %v1338
        %v1341 = vmul.f32 %v1339, 1.442695
        %v1342 = vpow.pop %v1341
        %v1343 = vmul.f32 %v1340, 1.442695
        %v1344 = vpow.pop %v1343
        %v1345 = vsel %vm957, %v1342, 0.0
        %1346 = vadd.xlane.f32.xlu0 %v1345
        %v1347 = vpop.xlane.xlu0 %1346
        %v1348 = vsel %vm957, %v1344, 0.0
        %1349 = vadd.xlane.f32.xlu0 %v1348
        %v1350 = vpop.xlane.xlu0 %1349
        %v1351 = vrcp.pop %v1347
        %v1352 = vrcp.pop %v1350
        %v1353 = vpack.c.bf16 %v1344, %v1342
        %v1355 = vsel %vm957, %v1353, 0
        %1357 = vmatprep.subr.bf16.mxu0 0
        %1358 = vmatpush1.bf16.msra.mxu0 %v1288
        %1359 = vmatprep.subr.bf16.mxu0 0
        %1360 = vmatpush1.bf16.msra.mxu0 0
        %1361 = vmatprep.subr.bf16.mxu0 0
        %1362 = vmatpush1.bf16.msra.mxu0 0
        %1363 = vmatprep.subr.bf16.mxu0 0
        %1364 = vmatpush1.bf16.msra.mxu0 0
        %1365 = vmatprep.subr.bf16.mxu0 0
        %1366 = vmatpush1.bf16.msra.mxu0 0
        %1367 = vmatprep.subr.bf16.mxu0 0
        %1368 = vmatpush1.bf16.msra.mxu0 0
        %1369 = vmatprep.subr.bf16.mxu0 0
        %1370 = vmatpush1.bf16.msra.mxu0 0
        %1371 = vmatprep.subr.bf16.mxu0 0
        %1372 = vmatpush1.bf16.msra.mxu0 0
        %1373 = vmatprep.subr.bf16.mxu0 0
        %1374 = vmatpush1.bf16.msra.mxu0 0
        %1375 = vmatprep.subr.bf16.mxu0 0
        %1376 = vmatpush1.bf16.msra.mxu0 0
        %1377 = vmatprep.subr.bf16.mxu0 0
        %1378 = vmatpush1.bf16.msra.mxu0 0
        %1379 = vmatprep.subr.bf16.mxu0 0
        %1380 = vmatpush1.bf16.msra.mxu0 0
        %1381 = vmatprep.subr.bf16.mxu0 0
        %1382 = vmatpush1.bf16.msra.mxu0 0
        %1383 = vmatprep.subr.bf16.mxu0 0
        %1384 = vmatpush1.bf16.msra.mxu0 0
        %1385 = vmatprep.subr.bf16.mxu0 0
        %1386 = vmatpush1.bf16.msra.mxu0 0
        %1387 = vmatprep.subr.bf16.mxu0 0
        %1388 = vmatpush1.bf16.msra.mxu0 0
        %1389 = vmatprep.mubr.bf16.mxu0 0
        %1390 = vmatmul.mubr.bf16.gmra.mrb[0].mxu0 %v1355
        %v1391 = vpop.f32.mrb[0].mxu0
        %v1392 = vadd.f32 0.0, %v1391
        %v1393 = vpop.f32.mrb[0].mxu0
        %v1394 = vpop.f32.mrb[0].mxu0
        %v1395 = vadd.f32 0.0, %v1394
        %v1396 = vpop.f32.mrb[0].mxu0
        %1397 = vdwg.mxu0
        %v1398 = vmul.f32 %v1392, %v1351
        %v1399 = vmul.f32 %v1395, %v1352
        %v1400 = vadd.f32 %v1275, %v1398
        %v1401 = vadd.f32 %v1276, %v1399
        %v1402 = vadd.f32 %v1400, %v711
        %v1403 = vadd.f32 %v1401, %v712
        %v1404 = vsel %vm730, %v1402, 0.0
        %1405 = vadd.xlane.f32.xlu0 %v1404
        %v1406 = vpop.xlane.xlu0 %1405
        %v1407 = vsel %vm730, %v1403, 0.0
        %1408 = vadd.xlane.f32.xlu0 %v1407
        %v1409 = vpop.xlane.xlu0 %1408
        %v1410 = vrcp.pop 32.0
        %v1411 = vmul.f32 %v1406, %v1410
        %v1412 = vmul.f32 %v1409, %v1410
        %v1413 = vsub.f32 %v1402, %v1411
        %v1414 = vsub.f32 %v1403, %v1412
        %v1415 = vmul.f32 %v1413, %v1413
        %v1416 = vmul.f32 %v1414, %v1414
        %v1417 = vsel %vm730, %v1415, 0.0
        %1418 = vadd.xlane.f32.xlu0 %v1417
        %v1419 = vpop.xlane.xlu0 %1418
        %v1420 = vsel %vm730, %v1416, 0.0
        %1421 = vadd.xlane.f32.xlu0 %v1420
        %v1422 = vpop.xlane.xlu0 %1421
        %v1423 = vmul.f32 %v1419, %v1410
        %v1424 = vmul.f32 %v1422, %v1410
        %v1425 = vadd.f32 %v1423, 1e-05
        %v1426 = vadd.f32 %v1424, 1e-05
        %v1427 = vrsqrt.pop %v1425
        %v1428 = vrsqrt.pop %v1426
        %v1429 = vmul.f32 %v1413, %v1427
        %v1430 = vmul.f32 %v1414, %v1428
        %v1431 = vld [vmem:[%s683] sm:$0x1]
        %v1433 = vlaneseq
        %v1434 = vshrl.u32 %v1433, 7
        %v1435 = vsub.s32 0, %v1434
        %v1436 = vrot.slane %v1431, %v1435
        %v1438 = vmul.f32 %v1429, %v1436
        %v1439 = vmul.f32 %v1430, %v1436
        %v1440 = vld [vmem:[%s570] sm:$0x1]
        %v1442 = vlaneseq
        %v1443 = vshrl.u32 %v1442, 7
        %v1444 = vsub.s32 0, %v1443
        %v1445 = vrot.slane %v1440, %v1444
        %v1447 = vadd.f32 %v1438, %v1445
        %v1448 = vadd.f32 %v1439, %v1445
        %v1449 = vpack.c.bf16 %v1448, %v1447
        %v1450 = vld [vmem:[%s579] sm:$0xf]
        %v1451 = vld [vmem:[%s579 + $0x4] sm:$0xf]
        %v1452 = vld [vmem:[%s579 + $0x8] sm:$0xf]
        %v1453 = vld [vmem:[%s579 + $0xc] sm:$0xf]
        %v1454 = vld [vmem:[%s587] sm:$0x1]
        %v1456 = vlaneseq
        %v1457 = vshrl.u32 %v1456, 7
        %v1458 = vsub.s32 0, %v1457
        %v1459 = vrot.slane %v1454, %v1458
        %v1465 = vunpack.c.l.b16 %v1450
        %v1466 = vunpack.c.l.b16 %v1451
        %v1467 = vunpack.c.l.b16 %v1452
        %v1468 = vunpack.c.l.b16 %v1453
        %v1469 = vpack.c.b16 %v1466, %v1465
        %v1470 = vpack.c.b16 %v1468, %v1467
        %v1474 = vsel %vm730, %v1449, 0
        %1476 = vmatprep.subr.bf16.mxu0 0
        %1477 = vmatpush1.bf16.msra.mxu0 %v1469
        %1478 = vmatprep.subr.bf16.mxu0 0
        %1479 = vmatpush1.bf16.msra.mxu0 %v1470
        %1480 = vmatprep.subr.bf16.mxu0 0
        %1481 = vmatpush1.bf16.msra.mxu0 0
        %1482 = vmatprep.subr.bf16.mxu0 0
        %1483 = vmatpush1.bf16.msra.mxu0 0
        %1484 = vmatprep.subr.bf16.mxu0 0
        %1485 = vmatpush1.bf16.msra.mxu0 0
        %1486 = vmatprep.subr.bf16.mxu0 0
        %1487 = vmatpush1.bf16.msra.mxu0 0
        %1488 = vmatprep.subr.bf16.mxu0 0
        %1489 = vmatpush1.bf16.msra.mxu0 0
        %1490 = vmatprep.subr.bf16.mxu0 0
        %1491 = vmatpush1.bf16.msra.mxu0 0
        %1492 = vmatprep.subr.bf16.mxu0 0
        %1493 = vmatpush1.bf16.msra.mxu0 0
        %1494 = vmatprep.subr.bf16.mxu0 0
        %1495 = vmatpush1.bf16.msra.mxu0 0
        %1496 = vmatprep.subr.bf16.mxu0 0
        %1497 = vmatpush1.bf16.msra.mxu0 0
        %1498 = vmatprep.subr.bf16.mxu0 0
        %1499 = vmatpush1.bf16.msra.mxu0 0
        %1500 = vmatprep.subr.bf16.mxu0 0
        %1501 = vmatpush1.bf16.msra.mxu0 0
        %1502 = vmatprep.subr.bf16.mxu0 0
        %1503 = vmatpush1.bf16.msra.mxu0 0
        %1504 = vmatprep.subr.bf16.mxu0 0
        %1505 = vmatpush1.bf16.msra.mxu0 0
        %1506 = vmatprep.subr.bf16.mxu0 0
        %1507 = vmatpush1.bf16.msra.mxu0 0
        %1508 = vmatprep.mubr.bf16.mxu0 0
        %1509 = vmatmul.mubr.bf16.gmra.mrb[0].mxu0 %v1474
        %v1510 = vpop.f32.mrb[0].mxu0
        %v1511 = vadd.f32 %v1459, %v1510
        %v1512 = vpop.f32.mrb[0].mxu0
        %v1513 = vpop.f32.mrb[0].mxu0
        %v1514 = vadd.f32 %v1459, %v1513
        %v1515 = vpop.f32.mrb[0].mxu0
        %1516 = vdwg.mxu0
        %v1517 = vmax.f32 %v1511, 0.0
        %v1518 = vmax.f32 %v1514, 0.0
        %v1519 = vpack.c.bf16 %v1518, %v1517
        %v1520 = vld [vmem:[%s688] sm:$0xf]
        %v1521 = vld [vmem:[%s688 + $0x4] sm:$0xf]
        %v1522 = vld [vmem:[%s688 + $0x8] sm:$0xf]
        %v1523 = vld [vmem:[%s688 + $0xc] sm:$0xf]
        %v1524 = vld [vmem:[%s688 + $0x10] sm:$0xf]
        %v1525 = vld [vmem:[%s688 + $0x14] sm:$0xf]
        %v1526 = vld [vmem:[%s688 + $0x18] sm:$0xf]
        %v1527 = vld [vmem:[%s688 + $0x1c] sm:$0xf]
        %v1528 = vld [vmem:[%s691] sm:$0x1]
        %v1530 = vlaneseq
        %v1531 = vshrl.u32 %v1530, 7
        %v1532 = vsub.s32 0, %v1531
        %v1533 = vrot.slane %v1528, %v1532
        %v1543 = vunpack.c.l.b16 %v1520
        %v1544 = vunpack.c.l.b16 %v1521
        %v1545 = vunpack.c.l.b16 %v1522
        %v1546 = vunpack.c.l.b16 %v1523
        %v1547 = vunpack.c.l.b16 %v1524
        %v1548 = vunpack.c.l.b16 %v1525
        %v1549 = vunpack.c.l.b16 %v1526
        %v1550 = vunpack.c.l.b16 %v1527
        %v1551 = vpack.c.b16 %v1544, %v1543
        %v1552 = vpack.c.b16 %v1546, %v1545
        %v1553 = vpack.c.b16 %v1548, %v1547
        %v1554 = vpack.c.b16 %v1550, %v1549
        %vm1559 = vcmask 523264
        %v1561 = vsel %vm1559, %v1519, 0
        %1563 = vmatprep.subr.bf16.mxu0 0
        %1564 = vmatpush1.bf16.msra.mxu0 %v1551
        %1565 = vmatprep.subr.bf16.mxu0 0
        %1566 = vmatpush1.bf16.msra.mxu0 %v1552
        %1567 = vmatprep.subr.bf16.mxu0 0
        %1568 = vmatpush1.bf16.msra.mxu0 %v1553
        %1569 = vmatprep.subr.bf16.mxu0 0
        %1570 = vmatpush1.bf16.msra.mxu0 %v1554
        %1571 = vmatprep.subr.bf16.mxu0 0
        %1572 = vmatpush1.bf16.msra.mxu0 0
        %1573 = vmatprep.subr.bf16.mxu0 0
        %1574 = vmatpush1.bf16.msra.mxu0 0
        %1575 = vmatprep.subr.bf16.mxu0 0
        %1576 = vmatpush1.bf16.msra.mxu0 0
        %1577 = vmatprep.subr.bf16.mxu0 0
        %1578 = vmatpush1.bf16.msra.mxu0 0
        %1579 = vmatprep.subr.bf16.mxu0 0
        %1580 = vmatpush1.bf16.msra.mxu0 0
        %1581 = vmatprep.subr.bf16.mxu0 0
        %1582 = vmatpush1.bf16.msra.mxu0 0
        %1583 = vmatprep.subr.bf16.mxu0 0
        %1584 = vmatpush1.bf16.msra.mxu0 0
        %1585 = vmatprep.subr.bf16.mxu0 0
        %1586 = vmatpush1.bf16.msra.mxu0 0
        %1587 = vmatprep.subr.bf16.mxu0 0
        %1588 = vmatpush1.bf16.msra.mxu0 0
        %1589 = vmatprep.subr.bf16.mxu0 0
        %1590 = vmatpush1.bf16.msra.mxu0 0
        %1591 = vmatprep.subr.bf16.mxu0 0
        %1592 = vmatpush1.bf16.msra.mxu0 0
        %1593 = vmatprep.subr.bf16.mxu0 0
        %1594 = vmatpush1.bf16.msra.mxu0 0
        %1595 = vmatprep.mubr.bf16.mxu0 0
        %1596 = vmatmul.mubr.bf16.gmra.mrb[0].mxu0 %v1561
        %v1597 = vpop.f32.mrb[0].mxu0
        %v1598 = vadd.f32 %v1533, %v1597
        %v1599 = vpop.f32.mrb[0].mxu0
        %v1600 = vpop.f32.mrb[0].mxu0
        %v1601 = vadd.f32 %v1533, %v1600
        %v1602 = vpop.f32.mrb[0].mxu0
        %1603 = vdwg.mxu0
        %v1604 = vadd.f32 %v1598, %v1447
        %v1605 = vadd.f32 %v1601, %v1448
        %v1606 = vsel %vm730, %v1604, 0.0
        %1607 = vadd.xlane.f32.xlu0 %v1606
        %v1608 = vpop.xlane.xlu0 %1607
        %v1609 = vsel %vm730, %v1605, 0.0
        %1610 = vadd.xlane.f32.xlu0 %v1609
        %v1611 = vpop.xlane.xlu0 %1610
        %v1612 = vmul.f32 %v1608, %v1410
        %v1613 = vmul.f32 %v1611, %v1410
        %v1614 = vsub.f32 %v1604, %v1612
        %v1615 = vsub.f32 %v1605, %v1613
        %v1616 = vmul.f32 %v1614, %v1614
        %v1617 = vmul.f32 %v1615, %v1615
        %v1618 = vsel %vm730, %v1616, 0.0
        %1619 = vadd.xlane.f32.xlu0 %v1618
        %v1620 = vpop.xlane.xlu0 %1619
        %v1621 = vsel %vm730, %v1617, 0.0
        %1622 = vadd.xlane.f32.xlu0 %v1621
        %v1623 = vpop.xlane.xlu0 %1622
        %v1624 = vmul.f32 %v1620, %v1410
        %v1625 = vmul.f32 %v1623, %v1410
        %v1626 = vadd.f32 %v1624, 1e-05
        %v1627 = vadd.f32 %v1625, 1e-05
        %v1628 = vrsqrt.pop %v1626
        %v1629 = vrsqrt.pop %v1627
        %v1630 = vmul.f32 %v1614, %v1628
        %v1631 = vmul.f32 %v1615, %v1629
        %v1632 = vld [vmem:[%s694] sm:$0x1]
        %v1634 = vlaneseq
        %v1635 = vshrl.u32 %v1634, 7
        %v1636 = vsub.s32 0, %v1635
        %v1637 = vrot.slane %v1632, %v1636
        %v1639 = vmul.f32 %v1630, %v1637
        %v1640 = vmul.f32 %v1631, %v1637
        %v1641 = vld [vmem:[%s697] sm:$0x1]
        %v1643 = vlaneseq
        %v1644 = vshrl.u32 %v1643, 7
        %v1645 = vsub.s32 0, %v1644
        %v1646 = vrot.slane %v1641, %v1645
        %v1648 = vadd.f32 %v1639, %v1646
        %v1649 = vadd.f32 %v1640, %v1646
        %1650 = vst.msk [vmem:[#allocation2] sm:$0xff] %vm730, %v1648
        %1651 = vst.msk [vmem:[#allocation2 + $0x8] sm:$0xff] %vm730, %v1649
        %p1652 = scmp.eq.s32.totalorder %s32, 1
        // Predicated region
        $region97: #{tpu_custom_call.1} parent=71 // pred_check
          %p1653 = pneg %p1652
        $region98: #{tpu_custom_call.1} parent=71 // pred_check_branch
          %1655 = sbr.rel (%p1653) target = $region100
        $region99: #{tpu_custom_call.1} parent=71 // pred_region
          %1656 = vst.msk [vmem:[#allocation11] sm:$0xff] %vm730, %v1648
          %1657 = vst.msk [vmem:[#allocation11 + $0x8] sm:$0xff] %vm730, %v1649
        $region100: #{tpu_custom_call.1} parent=71 // pred_fallthru
          _
        // Predicated region
        $region101: #{tpu_custom_call.1} parent=71 // pred_check
          %p1658 = pneg %p390
        $region102: #{tpu_custom_call.1} parent=71 // pred_check_branch
          %1660 = sbr.rel (%p1658) target = $region104
        $region103: #{tpu_custom_call.1} parent=71 // pred_region
          %s1661 = smul.u32 2, %s31
          %s1663 = ssub.s32 256, 256
          %1664 = vsyncadd [#allocation5], %s1663
          %s1665 = smul.addr %s1661, 128
          %s1666 = scalar_lea.hbm %s13, %s1665
          %s1667 = sshll.u32 [#allocation11], 4
          %s1668 = int_to_ptr.vmem [resolvable:$true] %s1667
          %1673 = dma.vmem_to_hbm [thread:$0]  %s1668, 256, %s1666, [#allocation5], 128, 128, 8
        $region104: #{tpu_custom_call.1} parent=71 // pred_fallthru
          _
        // Predicated region
        $region105: #{tpu_custom_call.1} parent=71 // pred_check
          %p1674 = pneg %p390
        $region106: #{tpu_custom_call.1} parent=71 // pred_check_branch
          %1676 = sbr.rel (%p1674) target = $region108
        $region107: #{tpu_custom_call.1} parent=71 // pred_region
          %1677 = dma.done [#allocation5], 256
        $region108: #{tpu_custom_call.1} parent=71 // pred_fallthru
          _
      $region72: #{tpu_custom_call.1} parent=5 // pred_fallthru
        _
      %p1678 = scmp.le.s32.totalorder 2, %s22
      // Predicated region
      $region109: #{tpu_custom_call.1} parent=5 // pred_check
        %p1679 = pneg %p1678
      $region110: #{tpu_custom_call.1} parent=5 // pred_check_branch
        %1681 = sbr.rel (%p1679) target = $region112
      $region111: #{tpu_custom_call.1} parent=5 // pred_region
        %s1682 = ssub.s32 %s22, 2
      $region112: #{tpu_custom_call.1} parent=5 // pred_fallthru
        _
    $region6: #{tpu_custom_call.1} parent=1 // loop_footer
      %s26 = sadd.s32 1, %s22
    $region7: #{tpu_custom_call.1} parent=1 // loop_footer_branch
      %21 = sbr.rel target = $region3
    $region8: #{tpu_custom_call.1} parent=1 // loop_exit
      _
    %1683 = vsyncpa [#allocation4], 1
    %s1684 = scalar_lea.sflag [#allocation4], 1
    %1685 = vsyncpa %s1684, 1
    %1686 = vsyncpa [#allocation7], 1
    %1687 = vsyncpa [#allocation5], 1
    %s1688 = scalar_lea.sflag [#allocation5], 1
    %1689 = vsyncpa %s1688, 1

</llo_original>
